<compile_context>
chip_gen: v5e
topology: v5e:2x2
jax: 0.10.0
libtpu: 0.0.40
codegen_flags: <defaults>
</compile_context>

<pallas_src>
import functools
import numpy as np
import jax
import jax.numpy as jnp
from jax import lax
from jax.experimental import pallas as pl
from jax.experimental.pallas import tpu as pltpu


# ----------------------------------------------------------------------------
# In-kernel helpers
# ----------------------------------------------------------------------------
def _erf(x):
    # Abramowitz & Stegun 7.1.26 rational approximation (max abs err ~1.5e-7).
    # Only exp/mul/add/div so it lowers cleanly on Mosaic.
    a1, a2, a3, a4, a5 = (0.254829592, -0.284496736, 1.421413741,
                          -1.453152027, 1.061405429)
    p = 0.3275911
    sign = jnp.where(x >= 0.0, 1.0, -1.0)
    ax = jnp.abs(x)
    # NOTE: pl.reciprocal(1+p*ax, approx=True) would offload this divide to the EUP
    # (helps v5e's saturated VALU) but is kept exact to preserve the 1e-3 tolerance
    # across the layer stack.
    t = 1.0 / (1.0 + p * ax)
    poly = ((((a5 * t + a4) * t + a3) * t + a2) * t + a1) * t
    return sign * (1.0 - poly * jnp.exp(-ax * ax))


def _gelu_exact(x):
    # F.gelu default (erf formulation): 0.5 * x * (1 + erf(x / sqrt(2)))
    return 0.5 * x * (1.0 + _erf(x * np.float32(1.0 / np.sqrt(2.0))))


def _shift_lanes(h, s):
    """out[:, j] = h[:, j + s], zeros shifted in at the global edges. Static s."""
    if s == 0:
        return h
    c, m = h.shape
    z = jnp.zeros((c, abs(s)), dtype=h.dtype)
    if s > 0:
        return jnp.concatenate([h[:, s:], z], axis=1)
    return jnp.concatenate([z, h[:, :m + s]], axis=1)


def _dilated_conv_stacked(h, w_ref, b_ref, pos, *, K, dilation, pad, L):
    """h: (C_in, M) f32; w_ref: (C_out, K*C_in); b_ref: (C_out, 1);
       pos: (1, M) int32 position-within-sample. Returns (C_out, M) f32."""
    taps = []
    for k in range(K):                       # static unroll over taps
        s = k * dilation - pad               # read offset of tap k
        hk = _shift_lanes(h, s)
        if s != 0:
            # zero-padding + sample-boundary mask in one select
            valid = jnp.logical_and(pos + s >= 0, pos + s < L)
            hk = jnp.where(valid, hk, 0.0)
        taps.append(hk)
    hc = jnp.concatenate(taps, axis=0)       # (K*C_in, M) im2col stack (sublane axis)
    out = jnp.dot(w_ref[...].astype(jnp.float32), hc,
                  preferred_element_type=jnp.float32)
    return out + b_ref[...].astype(jnp.float32)


def _make_encoder_kernel(layer_meta, L, M):
    """layer_meta: list of (K, dilation, pad, has_proj) per ConvBlock."""
    def kernel(*refs):
        x_ref, o_ref = refs[0], refs[-1]
        w_refs = refs[1:-1]
        # Hoisted once: column position inside its sample (lane axis = batch*length).
        pos = lax.broadcasted_iota(jnp.int32, (1, M), 1) % L
        h = x_ref[...].astype(jnp.float32)                  # (C0, M)
        i = 0
        for (K, dilation, pad, has_proj) in layer_meta:     # static unroll over layers
            w1, b1, w2, b2 = w_refs[i], w_refs[i + 1], w_refs[i + 2], w_refs[i + 3]
            i += 4
            if has_proj:
                wp, bp = w_refs[i], w_refs[i + 1]
                i += 2
                residual = jnp.dot(wp[...].astype(jnp.float32), h,
                                   preferred_element_type=jnp.float32)
                residual = residual + bp[...].astype(jnp.float32)
            else:
                residual = h
            g = _gelu_exact(h)
            g = _dilated_conv_stacked(g, w1, b1, pos, K=K, dilation=dilation, pad=pad, L=L)
            g = _gelu_exact(g)
            g = _dilated_conv_stacked(g, w2, b2, pos, K=K, dilation=dilation, pad=pad, L=L)
            h = g + residual
        o_ref[...] = h.astype(o_ref.dtype)
    return kernel


# ----------------------------------------------------------------------------
# Parameter prep (done ONCE, not per forward call)
# ----------------------------------------------------------------------------
def prepare_encoder_params(params, kernel_size):
    """params: list of PyTorch-shaped (w1 (Co,Ci,K), b1 (Co,), w2 (Co,Co,K), b2 (Co,),
       wp (Co,Ci,1)|None, bp (Co,)|None). Returns (prepared, layer_meta)."""
    prepared, meta = [], []
    for i, (w1, b1, w2, b2, wp, bp) in enumerate(params):
        K = kernel_size
        dilation = 2 ** i
        rf = (K - 1) * dilation + 1
        # TODO(synk): even receptive-field branch of SameShapeConv (out[:, :-1]) is not
        #             modeled; it only triggers for even rf (even kernel_size).
        assert rf % 2 == 1, "only odd receptive fields are supported"
        pad = rf // 2

        def flatten(w):  # (Co, Ci, K) -> (Co, K*Ci); tap-major to match the im2col stack
            co, ci, k = w.shape
            return jnp.transpose(jnp.asarray(w, jnp.float32), (0, 2, 1)).reshape(co, k * ci)

        layer = [flatten(w1), jnp.asarray(b1, jnp.float32)[:, None],
                 flatten(w2), jnp.asarray(b2, jnp.float32)[:, None]]
        has_proj = wp is not None
        if has_proj:
            layer += [jnp.asarray(wp[:, :, 0], jnp.float32),
                      jnp.asarray(bp, jnp.float32)[:, None]]
        prepared.append(tuple(layer))
        meta.append((K, dilation, pad, has_proj))
    return prepared, meta


# ----------------------------------------------------------------------------
# Wrapper: single pallas_call for the whole encoder, gridded over batch tiles
# ----------------------------------------------------------------------------
def _pick_batch_tile(N, L):
    divs = [d for d in range(1, N + 1) if N % d == 0]
    for require_multi_step in (True, False):
        for bt in sorted(divs, reverse=True):
            lanes = bt * L
            if lanes % 128 != 0 or lanes > 4096:
                continue
            if require_multi_step and N // bt < 2:
                continue
            return bt
    return N  # fallback: whole batch as one full-extent block (always legal)


def dilated_conv_encoder_forward(x, prepared, layer_meta, *, batch_tile=None):
    """x: (N, C_in, L) float32 in PyTorch NCL layout."""
    N, C_in, L = x.shape
    C_out_last = prepared[-1][0].shape[0]
    if batch_tile is None:
        batch_tile = _pick_batch_tile(N, L)
    assert N % batch_tile == 0
    M = batch_tile * L

    # Lane-dense layout: channels on sublanes, (batch, length) folded onto the lane axis.
    x_flat = jnp.transpose(x, (1, 0, 2)).reshape(C_in, N * L)

    kernel = _make_encoder_kernel(layer_meta, L, M)

    in_specs = [pl.BlockSpec((C_in, M), lambda n: (0, n))]
    args = [x_flat]
    for layer in prepared:
        for w in layer:
            in_specs.append(pl.BlockSpec(w.shape, lambda n: (0, 0)))  # resident weights
            args.append(w)

    out_flat = pl.pallas_call(
        kernel,
        out_shape=jax.ShapeDtypeStruct((C_out_last, N * L), x.dtype),
        grid=(N // batch_tile,),
        in_specs=in_specs,
        out_specs=pl.BlockSpec((C_out_last, M), lambda n: (0, n)),
        compiler_params=pltpu.CompilerParams(
            dimension_semantics=("parallel",),
            vmem_limit_bytes=32 * 1024 * 1024),
    )(*args)

    return jnp.transpose(out_flat.reshape(C_out_last, N, L), (1, 0, 2))


# ----------------------------------------------------------------------------
# Deterministic parameter init (PyTorch Conv1d-style uniform bounds)
# ----------------------------------------------------------------------------
def init_encoder_params(key, in_channels, channels, kernel_size):
    params = []
    c_prev = in_channels
    for c_out in channels:
        key, k1, k2, k3, k4, k5, k6 = jax.random.split(key, 7)

        def u(k, shape, fan_in):
            bound = 1.0 / np.sqrt(fan_in)
            return jax.random.uniform(k, shape, jnp.float32, -bound, bound)

        w1 = u(k1, (c_out, c_prev, kernel_size), c_prev * kernel_size)
        b1 = u(k2, (c_out,), c_prev * kernel_size)
        w2 = u(k3, (c_out, c_out, kernel_size), c_out * kernel_size)
        b2 = u(k4, (c_out,), c_out * kernel_size)
        if c_prev != c_out:
            wp = u(k5, (c_out, c_prev, 1), c_prev)
            bp = u(k6, (c_out,), c_prev)
        else:
            wp, bp = None, None
        params.append((w1, b1, w2, b2, wp, bp))
        c_prev = c_out
    return params


# ----------------------------------------------------------------------------
# Pure-JAX reference (exact PyTorch semantics) for verification
# ----------------------------------------------------------------------------
def _conv1d_ref(x, w, b, dilation, pad):
    out = lax.conv_general_dilated(
        x, w, window_strides=(1,), padding=[(pad, pad)],
        rhs_dilation=(dilation,), dimension_numbers=("NCH", "OIH", "NCH"),
        precision=lax.Precision.HIGHEST)
    return out + b[None, :, None]


def encoder_ref(x, params, kernel_size):
    for i, (w1, b1, w2, b2, wp, bp) in enumerate(params):
        d = 2 ** i
        pad = ((kernel_size - 1) * d + 1) // 2
        residual = x if wp is None else _conv1d_ref(x, wp, bp, 1, 0)
        h = jax.nn.gelu(x, approximate=False)
        h = _conv1d_ref(h, w1, b1, d, pad)
        h = jax.nn.gelu(h, approximate=False)
        h = _conv1d_ref(h, w2, b2, d, pad)
        x = h + residual
    return x


if __name__ == "__main__":
    key = jax.random.PRNGKey(0)
    in_channels = 8
    channels = [8, 16, 16]   # block0: no projector, block1: projector, block2: none
    kernel_size = 3          # dilations 1, 2, 4 -> odd receptive fields 3, 5, 9
    N, L = 8, 64             # batch_tile=4 -> 256-wide lane-dense tiles, 2 grid steps

    pkey, xkey = jax.random.split(key)
    params = init_encoder_params(pkey, in_channels, channels, kernel_size)
    prepared, layer_meta = prepare_encoder_params(params, kernel_size)
    x = jax.random.normal(xkey, (N, in_channels, L), jnp.float32)

    fwd = jax.jit(functools.partial(dilated_conv_encoder_forward,
                                    prepared=prepared, layer_meta=layer_meta))
    out = jax.block_until_ready(fwd(x))
    ref = jax.block_until_ready(encoder_ref(x, params, kernel_size))

    assert out.shape == (N, channels[-1], L), out.shape
    np.testing.assert_allclose(np.asarray(out), np.asarray(ref), atol=1e-3, rtol=1e-3)
    print("KERNEL_OK")
</pallas_src>

<mosaic_0001>
module attributes {stable_mosaic.version = 11 : i64} {
  func.func @kernel(%arg0: i32, %arg1: memref<8x256xf32, #tpu.memory_space<vmem>>, %arg2: memref<8x24xf32, #tpu.memory_space<vmem>>, %arg3: memref<8x1xf32, #tpu.memory_space<vmem>>, %arg4: memref<8x24xf32, #tpu.memory_space<vmem>>, %arg5: memref<8x1xf32, #tpu.memory_space<vmem>>, %arg6: memref<16x24xf32, #tpu.memory_space<vmem>>, %arg7: memref<16x1xf32, #tpu.memory_space<vmem>>, %arg8: memref<16x48xf32, #tpu.memory_space<vmem>>, %arg9: memref<16x1xf32, #tpu.memory_space<vmem>>, %arg10: memref<16x8xf32, #tpu.memory_space<vmem>>, %arg11: memref<16x1xf32, #tpu.memory_space<vmem>>, %arg12: memref<16x48xf32, #tpu.memory_space<vmem>>, %arg13: memref<16x1xf32, #tpu.memory_space<vmem>>, %arg14: memref<16x48xf32, #tpu.memory_space<vmem>>, %arg15: memref<16x1xf32, #tpu.memory_space<vmem>>, %arg16: memref<16x256xf32, #tpu.memory_space<vmem>>) attributes {dimension_semantics = [#tpu.dimension_semantics<parallel>], iteration_bounds = array<i64: 2>, scalar_prefetch = 0 : i64, scratch_operands = 0 : i64, tpu.core_type = #tpu.core_type<tc>, window_params = [{transform_indices = @transform_0, window_bounds = array<i64: 8, 256>}, {pipeline_mode = #tpu.pipeline_mode<synchronous>, transform_indices = @transform_1, window_bounds = array<i64: 8, 24>}, {pipeline_mode = #tpu.pipeline_mode<synchronous>, transform_indices = @transform_2, window_bounds = array<i64: 8, 1>}, {pipeline_mode = #tpu.pipeline_mode<synchronous>, transform_indices = @transform_3, window_bounds = array<i64: 8, 24>}, {pipeline_mode = #tpu.pipeline_mode<synchronous>, transform_indices = @transform_4, window_bounds = array<i64: 8, 1>}, {pipeline_mode = #tpu.pipeline_mode<synchronous>, transform_indices = @transform_5, window_bounds = array<i64: 16, 24>}, {pipeline_mode = #tpu.pipeline_mode<synchronous>, transform_indices = @transform_6, window_bounds = array<i64: 16, 1>}, {pipeline_mode = #tpu.pipeline_mode<synchronous>, transform_indices = @transform_7, window_bounds = array<i64: 16, 48>}, {pipeline_mode = #tpu.pipeline_mode<synchronous>, transform_indices = @transform_8, window_bounds = array<i64: 16, 1>}, {pipeline_mode = #tpu.pipeline_mode<synchronous>, transform_indices = @transform_9, window_bounds = array<i64: 16, 8>}, {pipeline_mode = #tpu.pipeline_mode<synchronous>, transform_indices = @transform_10, window_bounds = array<i64: 16, 1>}, {pipeline_mode = #tpu.pipeline_mode<synchronous>, transform_indices = @transform_11, window_bounds = array<i64: 16, 48>}, {pipeline_mode = #tpu.pipeline_mode<synchronous>, transform_indices = @transform_12, window_bounds = array<i64: 16, 1>}, {pipeline_mode = #tpu.pipeline_mode<synchronous>, transform_indices = @transform_13, window_bounds = array<i64: 16, 48>}, {pipeline_mode = #tpu.pipeline_mode<synchronous>, transform_indices = @transform_14, window_bounds = array<i64: 16, 1>}, {transform_indices = @transform_15, window_bounds = array<i64: 16, 256>}]} {
    %0 = tpu.iota {dimensions = array<i32: 1>} : vector<1x256xi32>
    %c64_i32 = arith.constant 64 : i32
    %c0_i32 = arith.constant 0 : i32
    %1 = arith.cmpi eq, %c64_i32, %c0_i32 : i32
    %c1_i32 = arith.constant 1 : i32
    %2 = arith.select %1, %c1_i32, %c64_i32 : i32
    %3 = vector.broadcast %2 : i32 to vector<1x256xi32>
    %4 = arith.remsi %0, %3 : vector<1x256xi32>
    %c0_i32_0 = arith.constant 0 : i32
    %5 = vector.broadcast %c0_i32_0 : i32 to vector<1x256xi32>
    %6 = arith.cmpi ne, %4, %5 : vector<1x256xi32>
    %c0_i32_1 = arith.constant 0 : i32
    %7 = vector.broadcast %c0_i32_1 : i32 to vector<1x256xi32>
    %8 = arith.cmpi slt, %4, %7 : vector<1x256xi32>
    %c0_i32_2 = arith.constant 0 : i32
    %9 = arith.cmpi slt, %2, %c0_i32_2 : i32
    %10 = vector.broadcast %9 : i1 to vector<1x256xi1>
    %11 = vector.broadcast %10 : vector<1x256xi1> to vector<1x256xi1>
    %12 = arith.xori %8, %11 : vector<1x256xi1>
    %13 = arith.andi %12, %6 : vector<1x256xi1>
    %14 = vector.broadcast %2 : i32 to vector<1x256xi32>
    %15 = arith.addi %4, %14 : vector<1x256xi32>
    %16 = arith.select %13, %15, %4 : vector<1x256xi1>, vector<1x256xi32>
    %c0 = arith.constant 0 : index
    %c0_3 = arith.constant 0 : index
    %17 = vector.load %arg1[%c0, %c0_3] : memref<8x256xf32, #tpu.memory_space<vmem>>, vector<8x256xf32>
    %cst = arith.constant 5.000000e-01 : f32
    %18 = vector.broadcast %cst : f32 to vector<8x256xf32>
    %19 = arith.mulf %18, %17 : vector<8x256xf32>
    %cst_4 = arith.constant 0.707106769 : f32
    %20 = vector.broadcast %cst_4 : f32 to vector<8x256xf32>
    %21 = arith.mulf %17, %20 : vector<8x256xf32>
    %cst_5 = arith.constant 0.000000e+00 : f32
    %22 = vector.broadcast %cst_5 : f32 to vector<8x256xf32>
    %23 = arith.cmpf oge, %21, %22 : vector<8x256xf32>
    %cst_6 = arith.constant 1.000000e+00 : f32
    %cst_7 = arith.constant -1.000000e+00 : f32
    %24 = vector.broadcast %cst_6 : f32 to vector<8x256xf32>
    %25 = vector.broadcast %cst_7 : f32 to vector<8x256xf32>
    %26 = arith.select %23, %24, %25 : vector<8x256xi1>, vector<8x256xf32>
    %27 = math.absf %21 : vector<8x256xf32>
    %cst_8 = arith.constant 0.327591091 : f32
    %28 = vector.broadcast %cst_8 : f32 to vector<8x256xf32>
    %29 = arith.mulf %28, %27 : vector<8x256xf32>
    %cst_9 = arith.constant 1.000000e+00 : f32
    %30 = vector.broadcast %cst_9 : f32 to vector<8x256xf32>
    %31 = arith.addf %30, %29 : vector<8x256xf32>
    %cst_10 = arith.constant 1.000000e+00 : f32
    %32 = vector.broadcast %cst_10 : f32 to vector<8x256xf32>
    %33 = arith.divf %32, %31 : vector<8x256xf32>
    %cst_11 = arith.constant 1.06140542 : f32
    %34 = vector.broadcast %cst_11 : f32 to vector<8x256xf32>
    %35 = arith.mulf %34, %33 : vector<8x256xf32>
    %cst_12 = arith.constant -1.45315206 : f32
    %36 = vector.broadcast %cst_12 : f32 to vector<8x256xf32>
    %37 = arith.addf %35, %36 : vector<8x256xf32>
    %38 = arith.mulf %37, %33 : vector<8x256xf32>
    %cst_13 = arith.constant 1.42141378 : f32
    %39 = vector.broadcast %cst_13 : f32 to vector<8x256xf32>
    %40 = arith.addf %38, %39 : vector<8x256xf32>
    %41 = arith.mulf %40, %33 : vector<8x256xf32>
    %cst_14 = arith.constant -0.284496725 : f32
    %42 = vector.broadcast %cst_14 : f32 to vector<8x256xf32>
    %43 = arith.addf %41, %42 : vector<8x256xf32>
    %44 = arith.mulf %43, %33 : vector<8x256xf32>
    %cst_15 = arith.constant 0.254829586 : f32
    %45 = vector.broadcast %cst_15 : f32 to vector<8x256xf32>
    %46 = arith.addf %44, %45 : vector<8x256xf32>
    %47 = arith.mulf %46, %33 : vector<8x256xf32>
    %cst_16 = arith.constant 0.000000e+00 : f32
    %48 = vector.broadcast %cst_16 : f32 to vector<8x256xf32>
    %49 = arith.subf %48, %27 : vector<8x256xf32>
    %50 = arith.mulf %49, %27 : vector<8x256xf32>
    %51 = math.exp %50 : vector<8x256xf32>
    %52 = arith.mulf %47, %51 : vector<8x256xf32>
    %cst_17 = arith.constant 1.000000e+00 : f32
    %53 = vector.broadcast %cst_17 : f32 to vector<8x256xf32>
    %54 = arith.subf %53, %52 : vector<8x256xf32>
    %55 = arith.mulf %26, %54 : vector<8x256xf32>
    %cst_18 = arith.constant 1.000000e+00 : f32
    %56 = vector.broadcast %cst_18 : f32 to vector<8x256xf32>
    %57 = arith.addf %56, %55 : vector<8x256xf32>
    %58 = arith.mulf %19, %57 : vector<8x256xf32>
    %cst_19 = arith.constant 0.000000e+00 : f32
    %59 = vector.broadcast %cst_19 : f32 to vector<8x1xf32>
    %60 = vector.extract_strided_slice %58 {offsets = [0, 0], sizes = [8, 255], strides = [1, 1]} : vector<8x256xf32> to vector<8x255xf32>
    %61 = tpu.concatenate %59, %60 in 1 : vector<8x1xf32>, vector<8x255xf32> -> vector<8x256xf32>
    %c-1_i32 = arith.constant -1 : i32
    %62 = vector.broadcast %c-1_i32 : i32 to vector<1x256xi32>
    %63 = arith.addi %16, %62 : vector<1x256xi32>
    %c0_i32_20 = arith.constant 0 : i32
    %64 = vector.broadcast %c0_i32_20 : i32 to vector<1x256xi32>
    %65 = arith.cmpi sge, %63, %64 : vector<1x256xi32>
    %c-1_i32_21 = arith.constant -1 : i32
    %66 = vector.broadcast %c-1_i32_21 : i32 to vector<1x256xi32>
    %67 = arith.addi %16, %66 : vector<1x256xi32>
    %c64_i32_22 = arith.constant 64 : i32
    %68 = vector.broadcast %c64_i32_22 : i32 to vector<1x256xi32>
    %69 = arith.cmpi slt, %67, %68 : vector<1x256xi32>
    %70 = arith.andi %65, %69 : vector<1x256xi1>
    %cst_23 = arith.constant 0.000000e+00 : f32
    %71 = vector.shape_cast %70 : vector<1x256xi1> to vector<1x256xi1>
    %72 = vector.broadcast %71 : vector<1x256xi1> to vector<8x256xi1>
    %73 = vector.broadcast %cst_23 : f32 to vector<8x256xf32>
    %74 = arith.select %72, %61, %73 : vector<8x256xi1>, vector<8x256xf32>
    %cst_24 = arith.constant 0.000000e+00 : f32
    %75 = vector.broadcast %cst_24 : f32 to vector<8x1xf32>
    %76 = vector.extract_strided_slice %58 {offsets = [0, 1], sizes = [8, 255], strides = [1, 1]} : vector<8x256xf32> to vector<8x255xf32>
    %77 = tpu.concatenate %76, %75 in 1 : vector<8x255xf32>, vector<8x1xf32> -> vector<8x256xf32>
    %c1_i32_25 = arith.constant 1 : i32
    %78 = vector.broadcast %c1_i32_25 : i32 to vector<1x256xi32>
    %79 = arith.addi %16, %78 : vector<1x256xi32>
    %c0_i32_26 = arith.constant 0 : i32
    %80 = vector.broadcast %c0_i32_26 : i32 to vector<1x256xi32>
    %81 = arith.cmpi sge, %79, %80 : vector<1x256xi32>
    %c1_i32_27 = arith.constant 1 : i32
    %82 = vector.broadcast %c1_i32_27 : i32 to vector<1x256xi32>
    %83 = arith.addi %16, %82 : vector<1x256xi32>
    %c64_i32_28 = arith.constant 64 : i32
    %84 = vector.broadcast %c64_i32_28 : i32 to vector<1x256xi32>
    %85 = arith.cmpi slt, %83, %84 : vector<1x256xi32>
    %86 = arith.andi %81, %85 : vector<1x256xi1>
    %cst_29 = arith.constant 0.000000e+00 : f32
    %87 = vector.shape_cast %86 : vector<1x256xi1> to vector<1x256xi1>
    %88 = vector.broadcast %87 : vector<1x256xi1> to vector<8x256xi1>
    %89 = vector.broadcast %cst_29 : f32 to vector<8x256xf32>
    %90 = arith.select %88, %77, %89 : vector<8x256xi1>, vector<8x256xf32>
    %91 = tpu.concatenate %74, %58, %90 in 0 : vector<8x256xf32>, vector<8x256xf32>, vector<8x256xf32> -> vector<24x256xf32>
    %c0_30 = arith.constant 0 : index
    %c0_31 = arith.constant 0 : index
    %92 = vector.load %arg2[%c0_30, %c0_31] : memref<8x24xf32, #tpu.memory_space<vmem>>, vector<8x24xf32>
    %cst_32 = arith.constant dense<0.000000e+00> : vector<8x256xf32>
    %93 = tpu.matmul %92, %91, %cst_32 {dimension_numbers = #tpu.dot_dimension_numbers<[1], [0], [0], [1], [0, 0, 1, 1], [], []>} : vector<8x24xf32>, vector<24x256xf32>, vector<8x256xf32> -> vector<8x256xf32>
    %c0_33 = arith.constant 0 : index
    %c0_34 = arith.constant 0 : index
    %94 = vector.load %arg3[%c0_33, %c0_34] : memref<8x1xf32, #tpu.memory_space<vmem>>, vector<8x1xf32>
    %95 = vector.broadcast %94 : vector<8x1xf32> to vector<8x256xf32>
    %96 = arith.addf %93, %95 : vector<8x256xf32>
    %cst_35 = arith.constant 5.000000e-01 : f32
    %97 = vector.broadcast %cst_35 : f32 to vector<8x256xf32>
    %98 = arith.mulf %97, %96 : vector<8x256xf32>
    %cst_36 = arith.constant 0.707106769 : f32
    %99 = vector.broadcast %cst_36 : f32 to vector<8x256xf32>
    %100 = arith.mulf %96, %99 : vector<8x256xf32>
    %cst_37 = arith.constant 0.000000e+00 : f32
    %101 = vector.broadcast %cst_37 : f32 to vector<8x256xf32>
    %102 = arith.cmpf oge, %100, %101 : vector<8x256xf32>
    %cst_38 = arith.constant 1.000000e+00 : f32
    %cst_39 = arith.constant -1.000000e+00 : f32
    %103 = vector.broadcast %cst_38 : f32 to vector<8x256xf32>
    %104 = vector.broadcast %cst_39 : f32 to vector<8x256xf32>
    %105 = arith.select %102, %103, %104 : vector<8x256xi1>, vector<8x256xf32>
    %106 = math.absf %100 : vector<8x256xf32>
    %cst_40 = arith.constant 0.327591091 : f32
    %107 = vector.broadcast %cst_40 : f32 to vector<8x256xf32>
    %108 = arith.mulf %107, %106 : vector<8x256xf32>
    %cst_41 = arith.constant 1.000000e+00 : f32
    %109 = vector.broadcast %cst_41 : f32 to vector<8x256xf32>
    %110 = arith.addf %109, %108 : vector<8x256xf32>
    %cst_42 = arith.constant 1.000000e+00 : f32
    %111 = vector.broadcast %cst_42 : f32 to vector<8x256xf32>
    %112 = arith.divf %111, %110 : vector<8x256xf32>
    %cst_43 = arith.constant 1.06140542 : f32
    %113 = vector.broadcast %cst_43 : f32 to vector<8x256xf32>
    %114 = arith.mulf %113, %112 : vector<8x256xf32>
    %cst_44 = arith.constant -1.45315206 : f32
    %115 = vector.broadcast %cst_44 : f32 to vector<8x256xf32>
    %116 = arith.addf %114, %115 : vector<8x256xf32>
    %117 = arith.mulf %116, %112 : vector<8x256xf32>
    %cst_45 = arith.constant 1.42141378 : f32
    %118 = vector.broadcast %cst_45 : f32 to vector<8x256xf32>
    %119 = arith.addf %117, %118 : vector<8x256xf32>
    %120 = arith.mulf %119, %112 : vector<8x256xf32>
    %cst_46 = arith.constant -0.284496725 : f32
    %121 = vector.broadcast %cst_46 : f32 to vector<8x256xf32>
    %122 = arith.addf %120, %121 : vector<8x256xf32>
    %123 = arith.mulf %122, %112 : vector<8x256xf32>
    %cst_47 = arith.constant 0.254829586 : f32
    %124 = vector.broadcast %cst_47 : f32 to vector<8x256xf32>
    %125 = arith.addf %123, %124 : vector<8x256xf32>
    %126 = arith.mulf %125, %112 : vector<8x256xf32>
    %cst_48 = arith.constant 0.000000e+00 : f32
    %127 = vector.broadcast %cst_48 : f32 to vector<8x256xf32>
    %128 = arith.subf %127, %106 : vector<8x256xf32>
    %129 = arith.mulf %128, %106 : vector<8x256xf32>
    %130 = math.exp %129 : vector<8x256xf32>
    %131 = arith.mulf %126, %130 : vector<8x256xf32>
    %cst_49 = arith.constant 1.000000e+00 : f32
    %132 = vector.broadcast %cst_49 : f32 to vector<8x256xf32>
    %133 = arith.subf %132, %131 : vector<8x256xf32>
    %134 = arith.mulf %105, %133 : vector<8x256xf32>
    %cst_50 = arith.constant 1.000000e+00 : f32
    %135 = vector.broadcast %cst_50 : f32 to vector<8x256xf32>
    %136 = arith.addf %135, %134 : vector<8x256xf32>
    %137 = arith.mulf %98, %136 : vector<8x256xf32>
    %cst_51 = arith.constant 0.000000e+00 : f32
    %138 = vector.broadcast %cst_51 : f32 to vector<8x1xf32>
    %139 = vector.extract_strided_slice %137 {offsets = [0, 0], sizes = [8, 255], strides = [1, 1]} : vector<8x256xf32> to vector<8x255xf32>
    %140 = tpu.concatenate %138, %139 in 1 : vector<8x1xf32>, vector<8x255xf32> -> vector<8x256xf32>
    %c-1_i32_52 = arith.constant -1 : i32
    %141 = vector.broadcast %c-1_i32_52 : i32 to vector<1x256xi32>
    %142 = arith.addi %16, %141 : vector<1x256xi32>
    %c0_i32_53 = arith.constant 0 : i32
    %143 = vector.broadcast %c0_i32_53 : i32 to vector<1x256xi32>
    %144 = arith.cmpi sge, %142, %143 : vector<1x256xi32>
    %c-1_i32_54 = arith.constant -1 : i32
    %145 = vector.broadcast %c-1_i32_54 : i32 to vector<1x256xi32>
    %146 = arith.addi %16, %145 : vector<1x256xi32>
    %c64_i32_55 = arith.constant 64 : i32
    %147 = vector.broadcast %c64_i32_55 : i32 to vector<1x256xi32>
    %148 = arith.cmpi slt, %146, %147 : vector<1x256xi32>
    %149 = arith.andi %144, %148 : vector<1x256xi1>
    %cst_56 = arith.constant 0.000000e+00 : f32
    %150 = vector.shape_cast %149 : vector<1x256xi1> to vector<1x256xi1>
    %151 = vector.broadcast %150 : vector<1x256xi1> to vector<8x256xi1>
    %152 = vector.broadcast %cst_56 : f32 to vector<8x256xf32>
    %153 = arith.select %151, %140, %152 : vector<8x256xi1>, vector<8x256xf32>
    %cst_57 = arith.constant 0.000000e+00 : f32
    %154 = vector.broadcast %cst_57 : f32 to vector<8x1xf32>
    %155 = vector.extract_strided_slice %137 {offsets = [0, 1], sizes = [8, 255], strides = [1, 1]} : vector<8x256xf32> to vector<8x255xf32>
    %156 = tpu.concatenate %155, %154 in 1 : vector<8x255xf32>, vector<8x1xf32> -> vector<8x256xf32>
    %c1_i32_58 = arith.constant 1 : i32
    %157 = vector.broadcast %c1_i32_58 : i32 to vector<1x256xi32>
    %158 = arith.addi %16, %157 : vector<1x256xi32>
    %c0_i32_59 = arith.constant 0 : i32
    %159 = vector.broadcast %c0_i32_59 : i32 to vector<1x256xi32>
    %160 = arith.cmpi sge, %158, %159 : vector<1x256xi32>
    %c1_i32_60 = arith.constant 1 : i32
    %161 = vector.broadcast %c1_i32_60 : i32 to vector<1x256xi32>
    %162 = arith.addi %16, %161 : vector<1x256xi32>
    %c64_i32_61 = arith.constant 64 : i32
    %163 = vector.broadcast %c64_i32_61 : i32 to vector<1x256xi32>
    %164 = arith.cmpi slt, %162, %163 : vector<1x256xi32>
    %165 = arith.andi %160, %164 : vector<1x256xi1>
    %cst_62 = arith.constant 0.000000e+00 : f32
    %166 = vector.shape_cast %165 : vector<1x256xi1> to vector<1x256xi1>
    %167 = vector.broadcast %166 : vector<1x256xi1> to vector<8x256xi1>
    %168 = vector.broadcast %cst_62 : f32 to vector<8x256xf32>
    %169 = arith.select %167, %156, %168 : vector<8x256xi1>, vector<8x256xf32>
    %170 = tpu.concatenate %153, %137, %169 in 0 : vector<8x256xf32>, vector<8x256xf32>, vector<8x256xf32> -> vector<24x256xf32>
    %c0_63 = arith.constant 0 : index
    %c0_64 = arith.constant 0 : index
    %171 = vector.load %arg4[%c0_63, %c0_64] : memref<8x24xf32, #tpu.memory_space<vmem>>, vector<8x24xf32>
    %cst_65 = arith.constant dense<0.000000e+00> : vector<8x256xf32>
    %172 = tpu.matmul %171, %170, %cst_65 {dimension_numbers = #tpu.dot_dimension_numbers<[1], [0], [0], [1], [0, 0, 1, 1], [], []>} : vector<8x24xf32>, vector<24x256xf32>, vector<8x256xf32> -> vector<8x256xf32>
    %c0_66 = arith.constant 0 : index
    %c0_67 = arith.constant 0 : index
    %173 = vector.load %arg5[%c0_66, %c0_67] : memref<8x1xf32, #tpu.memory_space<vmem>>, vector<8x1xf32>
    %174 = vector.broadcast %173 : vector<8x1xf32> to vector<8x256xf32>
    %175 = arith.addf %172, %174 : vector<8x256xf32>
    %176 = arith.addf %175, %17 : vector<8x256xf32>
    %c0_68 = arith.constant 0 : index
    %c0_69 = arith.constant 0 : index
    %177 = vector.load %arg10[%c0_68, %c0_69] : memref<16x8xf32, #tpu.memory_space<vmem>>, vector<16x8xf32>
    %cst_70 = arith.constant dense<0.000000e+00> : vector<16x256xf32>
    %178 = tpu.matmul %177, %176, %cst_70 {dimension_numbers = #tpu.dot_dimension_numbers<[1], [0], [0], [1], [0, 0, 1, 1], [], []>} : vector<16x8xf32>, vector<8x256xf32>, vector<16x256xf32> -> vector<16x256xf32>
    %c0_71 = arith.constant 0 : index
    %c0_72 = arith.constant 0 : index
    %179 = vector.load %arg11[%c0_71, %c0_72] : memref<16x1xf32, #tpu.memory_space<vmem>>, vector<16x1xf32>
    %180 = vector.broadcast %179 : vector<16x1xf32> to vector<16x256xf32>
    %181 = arith.addf %178, %180 : vector<16x256xf32>
    %cst_73 = arith.constant 5.000000e-01 : f32
    %182 = vector.broadcast %cst_73 : f32 to vector<8x256xf32>
    %183 = arith.mulf %182, %176 : vector<8x256xf32>
    %cst_74 = arith.constant 0.707106769 : f32
    %184 = vector.broadcast %cst_74 : f32 to vector<8x256xf32>
    %185 = arith.mulf %176, %184 : vector<8x256xf32>
    %cst_75 = arith.constant 0.000000e+00 : f32
    %186 = vector.broadcast %cst_75 : f32 to vector<8x256xf32>
    %187 = arith.cmpf oge, %185, %186 : vector<8x256xf32>
    %cst_76 = arith.constant 1.000000e+00 : f32
    %cst_77 = arith.constant -1.000000e+00 : f32
    %188 = vector.broadcast %cst_76 : f32 to vector<8x256xf32>
    %189 = vector.broadcast %cst_77 : f32 to vector<8x256xf32>
    %190 = arith.select %187, %188, %189 : vector<8x256xi1>, vector<8x256xf32>
    %191 = math.absf %185 : vector<8x256xf32>
    %cst_78 = arith.constant 0.327591091 : f32
    %192 = vector.broadcast %cst_78 : f32 to vector<8x256xf32>
    %193 = arith.mulf %192, %191 : vector<8x256xf32>
    %cst_79 = arith.constant 1.000000e+00 : f32
    %194 = vector.broadcast %cst_79 : f32 to vector<8x256xf32>
    %195 = arith.addf %194, %193 : vector<8x256xf32>
    %cst_80 = arith.constant 1.000000e+00 : f32
    %196 = vector.broadcast %cst_80 : f32 to vector<8x256xf32>
    %197 = arith.divf %196, %195 : vector<8x256xf32>
    %cst_81 = arith.constant 1.06140542 : f32
    %198 = vector.broadcast %cst_81 : f32 to vector<8x256xf32>
    %199 = arith.mulf %198, %197 : vector<8x256xf32>
    %cst_82 = arith.constant -1.45315206 : f32
    %200 = vector.broadcast %cst_82 : f32 to vector<8x256xf32>
    %201 = arith.addf %199, %200 : vector<8x256xf32>
    %202 = arith.mulf %201, %197 : vector<8x256xf32>
    %cst_83 = arith.constant 1.42141378 : f32
    %203 = vector.broadcast %cst_83 : f32 to vector<8x256xf32>
    %204 = arith.addf %202, %203 : vector<8x256xf32>
    %205 = arith.mulf %204, %197 : vector<8x256xf32>
    %cst_84 = arith.constant -0.284496725 : f32
    %206 = vector.broadcast %cst_84 : f32 to vector<8x256xf32>
    %207 = arith.addf %205, %206 : vector<8x256xf32>
    %208 = arith.mulf %207, %197 : vector<8x256xf32>
    %cst_85 = arith.constant 0.254829586 : f32
    %209 = vector.broadcast %cst_85 : f32 to vector<8x256xf32>
    %210 = arith.addf %208, %209 : vector<8x256xf32>
    %211 = arith.mulf %210, %197 : vector<8x256xf32>
    %cst_86 = arith.constant 0.000000e+00 : f32
    %212 = vector.broadcast %cst_86 : f32 to vector<8x256xf32>
    %213 = arith.subf %212, %191 : vector<8x256xf32>
    %214 = arith.mulf %213, %191 : vector<8x256xf32>
    %215 = math.exp %214 : vector<8x256xf32>
    %216 = arith.mulf %211, %215 : vector<8x256xf32>
    %cst_87 = arith.constant 1.000000e+00 : f32
    %217 = vector.broadcast %cst_87 : f32 to vector<8x256xf32>
    %218 = arith.subf %217, %216 : vector<8x256xf32>
    %219 = arith.mulf %190, %218 : vector<8x256xf32>
    %cst_88 = arith.constant 1.000000e+00 : f32
    %220 = vector.broadcast %cst_88 : f32 to vector<8x256xf32>
    %221 = arith.addf %220, %219 : vector<8x256xf32>
    %222 = arith.mulf %183, %221 : vector<8x256xf32>
    %cst_89 = arith.constant 0.000000e+00 : f32
    %223 = vector.broadcast %cst_89 : f32 to vector<8x2xf32>
    %224 = vector.extract_strided_slice %222 {offsets = [0, 0], sizes = [8, 254], strides = [1, 1]} : vector<8x256xf32> to vector<8x254xf32>
    %225 = tpu.concatenate %223, %224 in 1 : vector<8x2xf32>, vector<8x254xf32> -> vector<8x256xf32>
    %c-2_i32 = arith.constant -2 : i32
    %226 = vector.broadcast %c-2_i32 : i32 to vector<1x256xi32>
    %227 = arith.addi %16, %226 : vector<1x256xi32>
    %c0_i32_90 = arith.constant 0 : i32
    %228 = vector.broadcast %c0_i32_90 : i32 to vector<1x256xi32>
    %229 = arith.cmpi sge, %227, %228 : vector<1x256xi32>
    %c-2_i32_91 = arith.constant -2 : i32
    %230 = vector.broadcast %c-2_i32_91 : i32 to vector<1x256xi32>
    %231 = arith.addi %16, %230 : vector<1x256xi32>
    %c64_i32_92 = arith.constant 64 : i32
    %232 = vector.broadcast %c64_i32_92 : i32 to vector<1x256xi32>
    %233 = arith.cmpi slt, %231, %232 : vector<1x256xi32>
    %234 = arith.andi %229, %233 : vector<1x256xi1>
    %cst_93 = arith.constant 0.000000e+00 : f32
    %235 = vector.shape_cast %234 : vector<1x256xi1> to vector<1x256xi1>
    %236 = vector.broadcast %235 : vector<1x256xi1> to vector<8x256xi1>
    %237 = vector.broadcast %cst_93 : f32 to vector<8x256xf32>
    %238 = arith.select %236, %225, %237 : vector<8x256xi1>, vector<8x256xf32>
    %cst_94 = arith.constant 0.000000e+00 : f32
    %239 = vector.broadcast %cst_94 : f32 to vector<8x2xf32>
    %240 = vector.extract_strided_slice %222 {offsets = [0, 2], sizes = [8, 254], strides = [1, 1]} : vector<8x256xf32> to vector<8x254xf32>
    %241 = tpu.concatenate %240, %239 in 1 : vector<8x254xf32>, vector<8x2xf32> -> vector<8x256xf32>
    %c2_i32 = arith.constant 2 : i32
    %242 = vector.broadcast %c2_i32 : i32 to vector<1x256xi32>
    %243 = arith.addi %16, %242 : vector<1x256xi32>
    %c0_i32_95 = arith.constant 0 : i32
    %244 = vector.broadcast %c0_i32_95 : i32 to vector<1x256xi32>
    %245 = arith.cmpi sge, %243, %244 : vector<1x256xi32>
    %c2_i32_96 = arith.constant 2 : i32
    %246 = vector.broadcast %c2_i32_96 : i32 to vector<1x256xi32>
    %247 = arith.addi %16, %246 : vector<1x256xi32>
    %c64_i32_97 = arith.constant 64 : i32
    %248 = vector.broadcast %c64_i32_97 : i32 to vector<1x256xi32>
    %249 = arith.cmpi slt, %247, %248 : vector<1x256xi32>
    %250 = arith.andi %245, %249 : vector<1x256xi1>
    %cst_98 = arith.constant 0.000000e+00 : f32
    %251 = vector.shape_cast %250 : vector<1x256xi1> to vector<1x256xi1>
    %252 = vector.broadcast %251 : vector<1x256xi1> to vector<8x256xi1>
    %253 = vector.broadcast %cst_98 : f32 to vector<8x256xf32>
    %254 = arith.select %252, %241, %253 : vector<8x256xi1>, vector<8x256xf32>
    %255 = tpu.concatenate %238, %222, %254 in 0 : vector<8x256xf32>, vector<8x256xf32>, vector<8x256xf32> -> vector<24x256xf32>
    %c0_99 = arith.constant 0 : index
    %c0_100 = arith.constant 0 : index
    %256 = vector.load %arg6[%c0_99, %c0_100] : memref<16x24xf32, #tpu.memory_space<vmem>>, vector<16x24xf32>
    %cst_101 = arith.constant dense<0.000000e+00> : vector<16x256xf32>
    %257 = tpu.matmul %256, %255, %cst_101 {dimension_numbers = #tpu.dot_dimension_numbers<[1], [0], [0], [1], [0, 0, 1, 1], [], []>} : vector<16x24xf32>, vector<24x256xf32>, vector<16x256xf32> -> vector<16x256xf32>
    %c0_102 = arith.constant 0 : index
    %c0_103 = arith.constant 0 : index
    %258 = vector.load %arg7[%c0_102, %c0_103] : memref<16x1xf32, #tpu.memory_space<vmem>>, vector<16x1xf32>
    %259 = vector.broadcast %258 : vector<16x1xf32> to vector<16x256xf32>
    %260 = arith.addf %257, %259 : vector<16x256xf32>
    %cst_104 = arith.constant 5.000000e-01 : f32
    %261 = vector.broadcast %cst_104 : f32 to vector<16x256xf32>
    %262 = arith.mulf %261, %260 : vector<16x256xf32>
    %cst_105 = arith.constant 0.707106769 : f32
    %263 = vector.broadcast %cst_105 : f32 to vector<16x256xf32>
    %264 = arith.mulf %260, %263 : vector<16x256xf32>
    %cst_106 = arith.constant 0.000000e+00 : f32
    %265 = vector.broadcast %cst_106 : f32 to vector<16x256xf32>
    %266 = arith.cmpf oge, %264, %265 : vector<16x256xf32>
    %cst_107 = arith.constant 1.000000e+00 : f32
    %cst_108 = arith.constant -1.000000e+00 : f32
    %267 = vector.broadcast %cst_107 : f32 to vector<16x256xf32>
    %268 = vector.broadcast %cst_108 : f32 to vector<16x256xf32>
    %269 = arith.select %266, %267, %268 : vector<16x256xi1>, vector<16x256xf32>
    %270 = math.absf %264 : vector<16x256xf32>
    %cst_109 = arith.constant 0.327591091 : f32
    %271 = vector.broadcast %cst_109 : f32 to vector<16x256xf32>
    %272 = arith.mulf %271, %270 : vector<16x256xf32>
    %cst_110 = arith.constant 1.000000e+00 : f32
    %273 = vector.broadcast %cst_110 : f32 to vector<16x256xf32>
    %274 = arith.addf %273, %272 : vector<16x256xf32>
    %cst_111 = arith.constant 1.000000e+00 : f32
    %275 = vector.broadcast %cst_111 : f32 to vector<16x256xf32>
    %276 = arith.divf %275, %274 : vector<16x256xf32>
    %cst_112 = arith.constant 1.06140542 : f32
    %277 = vector.broadcast %cst_112 : f32 to vector<16x256xf32>
    %278 = arith.mulf %277, %276 : vector<16x256xf32>
    %cst_113 = arith.constant -1.45315206 : f32
    %279 = vector.broadcast %cst_113 : f32 to vector<16x256xf32>
    %280 = arith.addf %278, %279 : vector<16x256xf32>
    %281 = arith.mulf %280, %276 : vector<16x256xf32>
    %cst_114 = arith.constant 1.42141378 : f32
    %282 = vector.broadcast %cst_114 : f32 to vector<16x256xf32>
    %283 = arith.addf %281, %282 : vector<16x256xf32>
    %284 = arith.mulf %283, %276 : vector<16x256xf32>
    %cst_115 = arith.constant -0.284496725 : f32
    %285 = vector.broadcast %cst_115 : f32 to vector<16x256xf32>
    %286 = arith.addf %284, %285 : vector<16x256xf32>
    %287 = arith.mulf %286, %276 : vector<16x256xf32>
    %cst_116 = arith.constant 0.254829586 : f32
    %288 = vector.broadcast %cst_116 : f32 to vector<16x256xf32>
    %289 = arith.addf %287, %288 : vector<16x256xf32>
    %290 = arith.mulf %289, %276 : vector<16x256xf32>
    %cst_117 = arith.constant 0.000000e+00 : f32
    %291 = vector.broadcast %cst_117 : f32 to vector<16x256xf32>
    %292 = arith.subf %291, %270 : vector<16x256xf32>
    %293 = arith.mulf %292, %270 : vector<16x256xf32>
    %294 = math.exp %293 : vector<16x256xf32>
    %295 = arith.mulf %290, %294 : vector<16x256xf32>
    %cst_118 = arith.constant 1.000000e+00 : f32
    %296 = vector.broadcast %cst_118 : f32 to vector<16x256xf32>
    %297 = arith.subf %296, %295 : vector<16x256xf32>
    %298 = arith.mulf %269, %297 : vector<16x256xf32>
    %cst_119 = arith.constant 1.000000e+00 : f32
    %299 = vector.broadcast %cst_119 : f32 to vector<16x256xf32>
    %300 = arith.addf %299, %298 : vector<16x256xf32>
    %301 = arith.mulf %262, %300 : vector<16x256xf32>
    %cst_120 = arith.constant 0.000000e+00 : f32
    %302 = vector.broadcast %cst_120 : f32 to vector<16x2xf32>
    %303 = vector.extract_strided_slice %301 {offsets = [0, 0], sizes = [16, 254], strides = [1, 1]} : vector<16x256xf32> to vector<16x254xf32>
    %304 = tpu.concatenate %302, %303 in 1 : vector<16x2xf32>, vector<16x254xf32> -> vector<16x256xf32>
    %c-2_i32_121 = arith.constant -2 : i32
    %305 = vector.broadcast %c-2_i32_121 : i32 to vector<1x256xi32>
    %306 = arith.addi %16, %305 : vector<1x256xi32>
    %c0_i32_122 = arith.constant 0 : i32
    %307 = vector.broadcast %c0_i32_122 : i32 to vector<1x256xi32>
    %308 = arith.cmpi sge, %306, %307 : vector<1x256xi32>
    %c-2_i32_123 = arith.constant -2 : i32
    %309 = vector.broadcast %c-2_i32_123 : i32 to vector<1x256xi32>
    %310 = arith.addi %16, %309 : vector<1x256xi32>
    %c64_i32_124 = arith.constant 64 : i32
    %311 = vector.broadcast %c64_i32_124 : i32 to vector<1x256xi32>
    %312 = arith.cmpi slt, %310, %311 : vector<1x256xi32>
    %313 = arith.andi %308, %312 : vector<1x256xi1>
    %cst_125 = arith.constant 0.000000e+00 : f32
    %314 = vector.shape_cast %313 : vector<1x256xi1> to vector<1x256xi1>
    %315 = vector.broadcast %314 : vector<1x256xi1> to vector<16x256xi1>
    %316 = vector.broadcast %cst_125 : f32 to vector<16x256xf32>
    %317 = arith.select %315, %304, %316 : vector<16x256xi1>, vector<16x256xf32>
    %cst_126 = arith.constant 0.000000e+00 : f32
    %318 = vector.broadcast %cst_126 : f32 to vector<16x2xf32>
    %319 = vector.extract_strided_slice %301 {offsets = [0, 2], sizes = [16, 254], strides = [1, 1]} : vector<16x256xf32> to vector<16x254xf32>
    %320 = tpu.concatenate %319, %318 in 1 : vector<16x254xf32>, vector<16x2xf32> -> vector<16x256xf32>
    %c2_i32_127 = arith.constant 2 : i32
    %321 = vector.broadcast %c2_i32_127 : i32 to vector<1x256xi32>
    %322 = arith.addi %16, %321 : vector<1x256xi32>
    %c0_i32_128 = arith.constant 0 : i32
    %323 = vector.broadcast %c0_i32_128 : i32 to vector<1x256xi32>
    %324 = arith.cmpi sge, %322, %323 : vector<1x256xi32>
    %c2_i32_129 = arith.constant 2 : i32
    %325 = vector.broadcast %c2_i32_129 : i32 to vector<1x256xi32>
    %326 = arith.addi %16, %325 : vector<1x256xi32>
    %c64_i32_130 = arith.constant 64 : i32
    %327 = vector.broadcast %c64_i32_130 : i32 to vector<1x256xi32>
    %328 = arith.cmpi slt, %326, %327 : vector<1x256xi32>
    %329 = arith.andi %324, %328 : vector<1x256xi1>
    %cst_131 = arith.constant 0.000000e+00 : f32
    %330 = vector.shape_cast %329 : vector<1x256xi1> to vector<1x256xi1>
    %331 = vector.broadcast %330 : vector<1x256xi1> to vector<16x256xi1>
    %332 = vector.broadcast %cst_131 : f32 to vector<16x256xf32>
    %333 = arith.select %331, %320, %332 : vector<16x256xi1>, vector<16x256xf32>
    %334 = tpu.concatenate %317, %301, %333 in 0 : vector<16x256xf32>, vector<16x256xf32>, vector<16x256xf32> -> vector<48x256xf32>
    %c0_132 = arith.constant 0 : index
    %c0_133 = arith.constant 0 : index
    %335 = vector.load %arg8[%c0_132, %c0_133] : memref<16x48xf32, #tpu.memory_space<vmem>>, vector<16x48xf32>
    %cst_134 = arith.constant dense<0.000000e+00> : vector<16x256xf32>
    %336 = tpu.matmul %335, %334, %cst_134 {dimension_numbers = #tpu.dot_dimension_numbers<[1], [0], [0], [1], [0, 0, 1, 1], [], []>} : vector<16x48xf32>, vector<48x256xf32>, vector<16x256xf32> -> vector<16x256xf32>
    %c0_135 = arith.constant 0 : index
    %c0_136 = arith.constant 0 : index
    %337 = vector.load %arg9[%c0_135, %c0_136] : memref<16x1xf32, #tpu.memory_space<vmem>>, vector<16x1xf32>
    %338 = vector.broadcast %337 : vector<16x1xf32> to vector<16x256xf32>
    %339 = arith.addf %336, %338 : vector<16x256xf32>
    %340 = arith.addf %339, %181 : vector<16x256xf32>
    %cst_137 = arith.constant 5.000000e-01 : f32
    %341 = vector.broadcast %cst_137 : f32 to vector<16x256xf32>
    %342 = arith.mulf %341, %340 : vector<16x256xf32>
    %cst_138 = arith.constant 0.707106769 : f32
    %343 = vector.broadcast %cst_138 : f32 to vector<16x256xf32>
    %344 = arith.mulf %340, %343 : vector<16x256xf32>
    %cst_139 = arith.constant 0.000000e+00 : f32
    %345 = vector.broadcast %cst_139 : f32 to vector<16x256xf32>
    %346 = arith.cmpf oge, %344, %345 : vector<16x256xf32>
    %cst_140 = arith.constant 1.000000e+00 : f32
    %cst_141 = arith.constant -1.000000e+00 : f32
    %347 = vector.broadcast %cst_140 : f32 to vector<16x256xf32>
    %348 = vector.broadcast %cst_141 : f32 to vector<16x256xf32>
    %349 = arith.select %346, %347, %348 : vector<16x256xi1>, vector<16x256xf32>
    %350 = math.absf %344 : vector<16x256xf32>
    %cst_142 = arith.constant 0.327591091 : f32
    %351 = vector.broadcast %cst_142 : f32 to vector<16x256xf32>
    %352 = arith.mulf %351, %350 : vector<16x256xf32>
    %cst_143 = arith.constant 1.000000e+00 : f32
    %353 = vector.broadcast %cst_143 : f32 to vector<16x256xf32>
    %354 = arith.addf %353, %352 : vector<16x256xf32>
    %cst_144 = arith.constant 1.000000e+00 : f32
    %355 = vector.broadcast %cst_144 : f32 to vector<16x256xf32>
    %356 = arith.divf %355, %354 : vector<16x256xf32>
    %cst_145 = arith.constant 1.06140542 : f32
    %357 = vector.broadcast %cst_145 : f32 to vector<16x256xf32>
    %358 = arith.mulf %357, %356 : vector<16x256xf32>
    %cst_146 = arith.constant -1.45315206 : f32
    %359 = vector.broadcast %cst_146 : f32 to vector<16x256xf32>
    %360 = arith.addf %358, %359 : vector<16x256xf32>
    %361 = arith.mulf %360, %356 : vector<16x256xf32>
    %cst_147 = arith.constant 1.42141378 : f32
    %362 = vector.broadcast %cst_147 : f32 to vector<16x256xf32>
    %363 = arith.addf %361, %362 : vector<16x256xf32>
    %364 = arith.mulf %363, %356 : vector<16x256xf32>
    %cst_148 = arith.constant -0.284496725 : f32
    %365 = vector.broadcast %cst_148 : f32 to vector<16x256xf32>
    %366 = arith.addf %364, %365 : vector<16x256xf32>
    %367 = arith.mulf %366, %356 : vector<16x256xf32>
    %cst_149 = arith.constant 0.254829586 : f32
    %368 = vector.broadcast %cst_149 : f32 to vector<16x256xf32>
    %369 = arith.addf %367, %368 : vector<16x256xf32>
    %370 = arith.mulf %369, %356 : vector<16x256xf32>
    %cst_150 = arith.constant 0.000000e+00 : f32
    %371 = vector.broadcast %cst_150 : f32 to vector<16x256xf32>
    %372 = arith.subf %371, %350 : vector<16x256xf32>
    %373 = arith.mulf %372, %350 : vector<16x256xf32>
    %374 = math.exp %373 : vector<16x256xf32>
    %375 = arith.mulf %370, %374 : vector<16x256xf32>
    %cst_151 = arith.constant 1.000000e+00 : f32
    %376 = vector.broadcast %cst_151 : f32 to vector<16x256xf32>
    %377 = arith.subf %376, %375 : vector<16x256xf32>
    %378 = arith.mulf %349, %377 : vector<16x256xf32>
    %cst_152 = arith.constant 1.000000e+00 : f32
    %379 = vector.broadcast %cst_152 : f32 to vector<16x256xf32>
    %380 = arith.addf %379, %378 : vector<16x256xf32>
    %381 = arith.mulf %342, %380 : vector<16x256xf32>
    %cst_153 = arith.constant 0.000000e+00 : f32
    %382 = vector.broadcast %cst_153 : f32 to vector<16x4xf32>
    %383 = vector.extract_strided_slice %381 {offsets = [0, 0], sizes = [16, 252], strides = [1, 1]} : vector<16x256xf32> to vector<16x252xf32>
    %384 = tpu.concatenate %382, %383 in 1 : vector<16x4xf32>, vector<16x252xf32> -> vector<16x256xf32>
    %c-4_i32 = arith.constant -4 : i32
    %385 = vector.broadcast %c-4_i32 : i32 to vector<1x256xi32>
    %386 = arith.addi %16, %385 : vector<1x256xi32>
    %c0_i32_154 = arith.constant 0 : i32
    %387 = vector.broadcast %c0_i32_154 : i32 to vector<1x256xi32>
    %388 = arith.cmpi sge, %386, %387 : vector<1x256xi32>
    %c-4_i32_155 = arith.constant -4 : i32
    %389 = vector.broadcast %c-4_i32_155 : i32 to vector<1x256xi32>
    %390 = arith.addi %16, %389 : vector<1x256xi32>
    %c64_i32_156 = arith.constant 64 : i32
    %391 = vector.broadcast %c64_i32_156 : i32 to vector<1x256xi32>
    %392 = arith.cmpi slt, %390, %391 : vector<1x256xi32>
    %393 = arith.andi %388, %392 : vector<1x256xi1>
    %cst_157 = arith.constant 0.000000e+00 : f32
    %394 = vector.shape_cast %393 : vector<1x256xi1> to vector<1x256xi1>
    %395 = vector.broadcast %394 : vector<1x256xi1> to vector<16x256xi1>
    %396 = vector.broadcast %cst_157 : f32 to vector<16x256xf32>
    %397 = arith.select %395, %384, %396 : vector<16x256xi1>, vector<16x256xf32>
    %cst_158 = arith.constant 0.000000e+00 : f32
    %398 = vector.broadcast %cst_158 : f32 to vector<16x4xf32>
    %399 = vector.extract_strided_slice %381 {offsets = [0, 4], sizes = [16, 252], strides = [1, 1]} : vector<16x256xf32> to vector<16x252xf32>
    %400 = tpu.concatenate %399, %398 in 1 : vector<16x252xf32>, vector<16x4xf32> -> vector<16x256xf32>
    %c4_i32 = arith.constant 4 : i32
    %401 = vector.broadcast %c4_i32 : i32 to vector<1x256xi32>
    %402 = arith.addi %16, %401 : vector<1x256xi32>
    %c0_i32_159 = arith.constant 0 : i32
    %403 = vector.broadcast %c0_i32_159 : i32 to vector<1x256xi32>
    %404 = arith.cmpi sge, %402, %403 : vector<1x256xi32>
    %c4_i32_160 = arith.constant 4 : i32
    %405 = vector.broadcast %c4_i32_160 : i32 to vector<1x256xi32>
    %406 = arith.addi %16, %405 : vector<1x256xi32>
    %c64_i32_161 = arith.constant 64 : i32
    %407 = vector.broadcast %c64_i32_161 : i32 to vector<1x256xi32>
    %408 = arith.cmpi slt, %406, %407 : vector<1x256xi32>
    %409 = arith.andi %404, %408 : vector<1x256xi1>
    %cst_162 = arith.constant 0.000000e+00 : f32
    %410 = vector.shape_cast %409 : vector<1x256xi1> to vector<1x256xi1>
    %411 = vector.broadcast %410 : vector<1x256xi1> to vector<16x256xi1>
    %412 = vector.broadcast %cst_162 : f32 to vector<16x256xf32>
    %413 = arith.select %411, %400, %412 : vector<16x256xi1>, vector<16x256xf32>
    %414 = tpu.concatenate %397, %381, %413 in 0 : vector<16x256xf32>, vector<16x256xf32>, vector<16x256xf32> -> vector<48x256xf32>
    %c0_163 = arith.constant 0 : index
    %c0_164 = arith.constant 0 : index
    %415 = vector.load %arg12[%c0_163, %c0_164] : memref<16x48xf32, #tpu.memory_space<vmem>>, vector<16x48xf32>
    %cst_165 = arith.constant dense<0.000000e+00> : vector<16x256xf32>
    %416 = tpu.matmul %415, %414, %cst_165 {dimension_numbers = #tpu.dot_dimension_numbers<[1], [0], [0], [1], [0, 0, 1, 1], [], []>} : vector<16x48xf32>, vector<48x256xf32>, vector<16x256xf32> -> vector<16x256xf32>
    %c0_166 = arith.constant 0 : index
    %c0_167 = arith.constant 0 : index
    %417 = vector.load %arg13[%c0_166, %c0_167] : memref<16x1xf32, #tpu.memory_space<vmem>>, vector<16x1xf32>
    %418 = vector.broadcast %417 : vector<16x1xf32> to vector<16x256xf32>
    %419 = arith.addf %416, %418 : vector<16x256xf32>
    %cst_168 = arith.constant 5.000000e-01 : f32
    %420 = vector.broadcast %cst_168 : f32 to vector<16x256xf32>
    %421 = arith.mulf %420, %419 : vector<16x256xf32>
    %cst_169 = arith.constant 0.707106769 : f32
    %422 = vector.broadcast %cst_169 : f32 to vector<16x256xf32>
    %423 = arith.mulf %419, %422 : vector<16x256xf32>
    %cst_170 = arith.constant 0.000000e+00 : f32
    %424 = vector.broadcast %cst_170 : f32 to vector<16x256xf32>
    %425 = arith.cmpf oge, %423, %424 : vector<16x256xf32>
    %cst_171 = arith.constant 1.000000e+00 : f32
    %cst_172 = arith.constant -1.000000e+00 : f32
    %426 = vector.broadcast %cst_171 : f32 to vector<16x256xf32>
    %427 = vector.broadcast %cst_172 : f32 to vector<16x256xf32>
    %428 = arith.select %425, %426, %427 : vector<16x256xi1>, vector<16x256xf32>
    %429 = math.absf %423 : vector<16x256xf32>
    %cst_173 = arith.constant 0.327591091 : f32
    %430 = vector.broadcast %cst_173 : f32 to vector<16x256xf32>
    %431 = arith.mulf %430, %429 : vector<16x256xf32>
    %cst_174 = arith.constant 1.000000e+00 : f32
    %432 = vector.broadcast %cst_174 : f32 to vector<16x256xf32>
    %433 = arith.addf %432, %431 : vector<16x256xf32>
    %cst_175 = arith.constant 1.000000e+00 : f32
    %434 = vector.broadcast %cst_175 : f32 to vector<16x256xf32>
    %435 = arith.divf %434, %433 : vector<16x256xf32>
    %cst_176 = arith.constant 1.06140542 : f32
    %436 = vector.broadcast %cst_176 : f32 to vector<16x256xf32>
    %437 = arith.mulf %436, %435 : vector<16x256xf32>
    %cst_177 = arith.constant -1.45315206 : f32
    %438 = vector.broadcast %cst_177 : f32 to vector<16x256xf32>
    %439 = arith.addf %437, %438 : vector<16x256xf32>
    %440 = arith.mulf %439, %435 : vector<16x256xf32>
    %cst_178 = arith.constant 1.42141378 : f32
    %441 = vector.broadcast %cst_178 : f32 to vector<16x256xf32>
    %442 = arith.addf %440, %441 : vector<16x256xf32>
    %443 = arith.mulf %442, %435 : vector<16x256xf32>
    %cst_179 = arith.constant -0.284496725 : f32
    %444 = vector.broadcast %cst_179 : f32 to vector<16x256xf32>
    %445 = arith.addf %443, %444 : vector<16x256xf32>
    %446 = arith.mulf %445, %435 : vector<16x256xf32>
    %cst_180 = arith.constant 0.254829586 : f32
    %447 = vector.broadcast %cst_180 : f32 to vector<16x256xf32>
    %448 = arith.addf %446, %447 : vector<16x256xf32>
    %449 = arith.mulf %448, %435 : vector<16x256xf32>
    %cst_181 = arith.constant 0.000000e+00 : f32
    %450 = vector.broadcast %cst_181 : f32 to vector<16x256xf32>
    %451 = arith.subf %450, %429 : vector<16x256xf32>
    %452 = arith.mulf %451, %429 : vector<16x256xf32>
    %453 = math.exp %452 : vector<16x256xf32>
    %454 = arith.mulf %449, %453 : vector<16x256xf32>
    %cst_182 = arith.constant 1.000000e+00 : f32
    %455 = vector.broadcast %cst_182 : f32 to vector<16x256xf32>
    %456 = arith.subf %455, %454 : vector<16x256xf32>
    %457 = arith.mulf %428, %456 : vector<16x256xf32>
    %cst_183 = arith.constant 1.000000e+00 : f32
    %458 = vector.broadcast %cst_183 : f32 to vector<16x256xf32>
    %459 = arith.addf %458, %457 : vector<16x256xf32>
    %460 = arith.mulf %421, %459 : vector<16x256xf32>
    %cst_184 = arith.constant 0.000000e+00 : f32
    %461 = vector.broadcast %cst_184 : f32 to vector<16x4xf32>
    %462 = vector.extract_strided_slice %460 {offsets = [0, 0], sizes = [16, 252], strides = [1, 1]} : vector<16x256xf32> to vector<16x252xf32>
    %463 = tpu.concatenate %461, %462 in 1 : vector<16x4xf32>, vector<16x252xf32> -> vector<16x256xf32>
    %c-4_i32_185 = arith.constant -4 : i32
    %464 = vector.broadcast %c-4_i32_185 : i32 to vector<1x256xi32>
    %465 = arith.addi %16, %464 : vector<1x256xi32>
    %c0_i32_186 = arith.constant 0 : i32
    %466 = vector.broadcast %c0_i32_186 : i32 to vector<1x256xi32>
    %467 = arith.cmpi sge, %465, %466 : vector<1x256xi32>
    %c-4_i32_187 = arith.constant -4 : i32
    %468 = vector.broadcast %c-4_i32_187 : i32 to vector<1x256xi32>
    %469 = arith.addi %16, %468 : vector<1x256xi32>
    %c64_i32_188 = arith.constant 64 : i32
    %470 = vector.broadcast %c64_i32_188 : i32 to vector<1x256xi32>
    %471 = arith.cmpi slt, %469, %470 : vector<1x256xi32>
    %472 = arith.andi %467, %471 : vector<1x256xi1>
    %cst_189 = arith.constant 0.000000e+00 : f32
    %473 = vector.shape_cast %472 : vector<1x256xi1> to vector<1x256xi1>
    %474 = vector.broadcast %473 : vector<1x256xi1> to vector<16x256xi1>
    %475 = vector.broadcast %cst_189 : f32 to vector<16x256xf32>
    %476 = arith.select %474, %463, %475 : vector<16x256xi1>, vector<16x256xf32>
    %cst_190 = arith.constant 0.000000e+00 : f32
    %477 = vector.broadcast %cst_190 : f32 to vector<16x4xf32>
    %478 = vector.extract_strided_slice %460 {offsets = [0, 4], sizes = [16, 252], strides = [1, 1]} : vector<16x256xf32> to vector<16x252xf32>
    %479 = tpu.concatenate %478, %477 in 1 : vector<16x252xf32>, vector<16x4xf32> -> vector<16x256xf32>
    %c4_i32_191 = arith.constant 4 : i32
    %480 = vector.broadcast %c4_i32_191 : i32 to vector<1x256xi32>
    %481 = arith.addi %16, %480 : vector<1x256xi32>
    %c0_i32_192 = arith.constant 0 : i32
    %482 = vector.broadcast %c0_i32_192 : i32 to vector<1x256xi32>
    %483 = arith.cmpi sge, %481, %482 : vector<1x256xi32>
    %c4_i32_193 = arith.constant 4 : i32
    %484 = vector.broadcast %c4_i32_193 : i32 to vector<1x256xi32>
    %485 = arith.addi %16, %484 : vector<1x256xi32>
    %c64_i32_194 = arith.constant 64 : i32
    %486 = vector.broadcast %c64_i32_194 : i32 to vector<1x256xi32>
    %487 = arith.cmpi slt, %485, %486 : vector<1x256xi32>
    %488 = arith.andi %483, %487 : vector<1x256xi1>
    %cst_195 = arith.constant 0.000000e+00 : f32
    %489 = vector.shape_cast %488 : vector<1x256xi1> to vector<1x256xi1>
    %490 = vector.broadcast %489 : vector<1x256xi1> to vector<16x256xi1>
    %491 = vector.broadcast %cst_195 : f32 to vector<16x256xf32>
    %492 = arith.select %490, %479, %491 : vector<16x256xi1>, vector<16x256xf32>
    %493 = tpu.concatenate %476, %460, %492 in 0 : vector<16x256xf32>, vector<16x256xf32>, vector<16x256xf32> -> vector<48x256xf32>
    %c0_196 = arith.constant 0 : index
    %c0_197 = arith.constant 0 : index
    %494 = vector.load %arg14[%c0_196, %c0_197] : memref<16x48xf32, #tpu.memory_space<vmem>>, vector<16x48xf32>
    %cst_198 = arith.constant dense<0.000000e+00> : vector<16x256xf32>
    %495 = tpu.matmul %494, %493, %cst_198 {dimension_numbers = #tpu.dot_dimension_numbers<[1], [0], [0], [1], [0, 0, 1, 1], [], []>} : vector<16x48xf32>, vector<48x256xf32>, vector<16x256xf32> -> vector<16x256xf32>
    %c0_199 = arith.constant 0 : index
    %c0_200 = arith.constant 0 : index
    %496 = vector.load %arg15[%c0_199, %c0_200] : memref<16x1xf32, #tpu.memory_space<vmem>>, vector<16x1xf32>
    %497 = vector.broadcast %496 : vector<16x1xf32> to vector<16x256xf32>
    %498 = arith.addf %495, %497 : vector<16x256xf32>
    %499 = arith.addf %498, %340 : vector<16x256xf32>
    %c0_201 = arith.constant 0 : index
    %c0_202 = arith.constant 0 : index
    %500 = vector.load %arg16[%c0_201, %c0_202] : memref<16x256xf32, #tpu.memory_space<vmem>>, vector<16x256xf32>
    tpu.vector_store %arg16[%c0_201, %c0_202], %499 {strides = array<i32>} : memref<16x256xf32, #tpu.memory_space<vmem>>, vector<16x256xf32>,
    return
  }
  func.func @transform_0(%arg0: i32) -> (i32, i32) {
    %c0_i32 = arith.constant 0 : i32
    %c0_i32_0 = arith.constant 0 : i32
    return %c0_i32, %arg0 : i32, i32
  }
  func.func @transform_1(%arg0: i32) -> (i32, i32) {
    %c0_i32 = arith.constant 0 : i32
    %c0_i32_0 = arith.constant 0 : i32
    %c0_i32_1 = arith.constant 0 : i32
    return %c0_i32, %c0_i32_0 : i32, i32
  }
  func.func @transform_2(%arg0: i32) -> (i32, i32) {
    %c0_i32 = arith.constant 0 : i32
    %c0_i32_0 = arith.constant 0 : i32
    %c0_i32_1 = arith.constant 0 : i32
    return %c0_i32, %c0_i32_0 : i32, i32
  }
  func.func @transform_3(%arg0: i32) -> (i32, i32) {
    %c0_i32 = arith.constant 0 : i32
    %c0_i32_0 = arith.constant 0 : i32
    %c0_i32_1 = arith.constant 0 : i32
    return %c0_i32, %c0_i32_0 : i32, i32
  }
  func.func @transform_4(%arg0: i32) -> (i32, i32) {
    %c0_i32 = arith.constant 0 : i32
    %c0_i32_0 = arith.constant 0 : i32
    %c0_i32_1 = arith.constant 0 : i32
    return %c0_i32, %c0_i32_0 : i32, i32
  }
  func.func @transform_5(%arg0: i32) -> (i32, i32) {
    %c0_i32 = arith.constant 0 : i32
    %c0_i32_0 = arith.constant 0 : i32
    %c0_i32_1 = arith.constant 0 : i32
    return %c0_i32, %c0_i32_0 : i32, i32
  }
  func.func @transform_6(%arg0: i32) -> (i32, i32) {
    %c0_i32 = arith.constant 0 : i32
    %c0_i32_0 = arith.constant 0 : i32
    %c0_i32_1 = arith.constant 0 : i32
    return %c0_i32, %c0_i32_0 : i32, i32
  }
  func.func @transform_7(%arg0: i32) -> (i32, i32) {
    %c0_i32 = arith.constant 0 : i32
    %c0_i32_0 = arith.constant 0 : i32
    %c0_i32_1 = arith.constant 0 : i32
    return %c0_i32, %c0_i32_0 : i32, i32
  }
  func.func @transform_8(%arg0: i32) -> (i32, i32) {
    %c0_i32 = arith.constant 0 : i32
    %c0_i32_0 = arith.constant 0 : i32
    %c0_i32_1 = arith.constant 0 : i32
    return %c0_i32, %c0_i32_0 : i32, i32
  }
  func.func @transform_9(%arg0: i32) -> (i32, i32) {
    %c0_i32 = arith.constant 0 : i32
    %c0_i32_0 = arith.constant 0 : i32
    %c0_i32_1 = arith.constant 0 : i32
    return %c0_i32, %c0_i32_0 : i32, i32
  }
  func.func @transform_10(%arg0: i32) -> (i32, i32) {
    %c0_i32 = arith.constant 0 : i32
    %c0_i32_0 = arith.constant 0 : i32
    %c0_i32_1 = arith.constant 0 : i32
    return %c0_i32, %c0_i32_0 : i32, i32
  }
  func.func @transform_11(%arg0: i32) -> (i32, i32) {
    %c0_i32 = arith.constant 0 : i32
    %c0_i32_0 = arith.constant 0 : i32
    %c0_i32_1 = arith.constant 0 : i32
    return %c0_i32, %c0_i32_0 : i32, i32
  }
  func.func @transform_12(%arg0: i32) -> (i32, i32) {
    %c0_i32 = arith.constant 0 : i32
    %c0_i32_0 = arith.constant 0 : i32
    %c0_i32_1 = arith.constant 0 : i32
    return %c0_i32, %c0_i32_0 : i32, i32
  }
  func.func @transform_13(%arg0: i32) -> (i32, i32) {
    %c0_i32 = arith.constant 0 : i32
    %c0_i32_0 = arith.constant 0 : i32
    %c0_i32_1 = arith.constant 0 : i32
    return %c0_i32, %c0_i32_0 : i32, i32
  }
  func.func @transform_14(%arg0: i32) -> (i32, i32) {
    %c0_i32 = arith.constant 0 : i32
    %c0_i32_0 = arith.constant 0 : i32
    %c0_i32_1 = arith.constant 0 : i32
    return %c0_i32, %c0_i32_0 : i32, i32
  }
  func.func @transform_15(%arg0: i32) -> (i32, i32) {
    %c0_i32 = arith.constant 0 : i32
    %c0_i32_0 = arith.constant 0 : i32
    return %c0_i32, %arg0 : i32, i32
  }
}

</mosaic_0001>

<llo_original>
// kernel: dilated_conv_encoder_forward.1
$region0: #{dilated_conv_encoder_forward.1}
  #allocation0 [shape = 'u32[]', space=smem, size = 0x4, offset = 0x4, fixed_abs, tag = 'smem constant byte address 0x4 - core index']
  #allocation1 [shape = 'u32[72,128]{1,0:T(1,128)}', space=vmem, size = 0x9000, scoped, tag = 'internal scratch']
  %s0 = inlined_call_operand.vmem [shape: f32[8,512], index: 0, kind: input, shape index: {}]
  %s1 = inlined_call_operand.vmem [shape: f32[8,24], index: 1, kind: input, shape index: {}]
  %s2 = inlined_call_operand.vmem [shape: f32[8,1], index: 2, kind: input, shape index: {}]
  %s3 = inlined_call_operand.vmem [shape: f32[8,24], index: 3, kind: input, shape index: {}]
  %s4 = inlined_call_operand.vmem [shape: f32[8,1], index: 4, kind: input, shape index: {}]
  %s5 = inlined_call_operand.vmem [shape: f32[16,24], index: 5, kind: input, shape index: {}]
  %s6 = inlined_call_operand.vmem [shape: f32[16,1], index: 6, kind: input, shape index: {}]
  %s7 = inlined_call_operand.vmem [shape: f32[16,48], index: 7, kind: input, shape index: {}]
  %s8 = inlined_call_operand.vmem [shape: f32[16,1], index: 8, kind: input, shape index: {}]
  %s9 = inlined_call_operand.vmem [shape: f32[16,8], index: 9, kind: input, shape index: {}]
  %s10 = inlined_call_operand.vmem [shape: f32[16,1], index: 10, kind: input, shape index: {}]
  %s11 = inlined_call_operand.vmem [shape: f32[16,48], index: 11, kind: input, shape index: {}]
  %s12 = inlined_call_operand.vmem [shape: f32[16,1], index: 12, kind: input, shape index: {}]
  %s13 = inlined_call_operand.vmem [shape: f32[16,48], index: 13, kind: input, shape index: {}]
  %s14 = inlined_call_operand.vmem [shape: f32[16,1], index: 14, kind: input, shape index: {}]
  %s15 = inlined_call_operand.vmem [shape: f32[16,512], index: 15, kind: output, shape index: {}]
  %s16 = sld [smem:[#allocation0]]
  $region112: #{dilated_conv_encoder_forward.1} parent=0
    _
  %s18 = ssub.s32 1, %s16
  %s19 = scalar_select 0, %s18, %s16
  $region1: #{dilated_conv_encoder_forward.1} parent=0
    #allocation2 [shape = 'u8[32768]{0}', space=vmem, size = 0x8000, scoped, tag = 'output window, operand 0']
    loop: start=0, step=1, limit=4
    $region2: #{dilated_conv_encoder_forward.1} parent=1 // loop_pre_header
      _
    $region3: #{dilated_conv_encoder_forward.1} parent=1 // loop_header
      %s21 = sphi 0, %s25
      %p22 = scmp.ge.s32.totalorder %s21, 4
      %s31 = sphi 0, %s33
      %s34 = sphi 0, %s31
      %s35 = sphi 0, %s34
      %s51 = sphi 0, %s35
      %s55 = sphi 0, %s55
      %s57 = sphi 0, %s55
      %s58 = sphi 0, %s57
      %s72 = sphi 0, %s58
      %s76 = sphi 0, %s76
      %s78 = sphi 0, %s76
      %s79 = sphi 0, %s78
      %s93 = sphi 0, %s79
      %s97 = sphi 0, %s97
      %s99 = sphi 0, %s97
      %s100 = sphi 0, %s99
      %s114 = sphi 0, %s100
      %s118 = sphi 0, %s118
      %s120 = sphi 0, %s118
      %s121 = sphi 0, %s120
      %s135 = sphi 0, %s121
      %s139 = sphi 0, %s139
      %s141 = sphi 0, %s139
      %s142 = sphi 0, %s141
      %s156 = sphi 0, %s142
      %s160 = sphi 0, %s160
      %s162 = sphi 0, %s160
      %s163 = sphi 0, %s162
      %s177 = sphi 0, %s163
      %s181 = sphi 0, %s181
      %s183 = sphi 0, %s181
      %s184 = sphi 0, %s183
      %s198 = sphi 0, %s184
      %s202 = sphi 0, %s202
      %s204 = sphi 0, %s202
      %s205 = sphi 0, %s204
      %s219 = sphi 0, %s205
      %s223 = sphi 0, %s223
      %s225 = sphi 0, %s223
      %s226 = sphi 0, %s225
      %s240 = sphi 0, %s226
      %s244 = sphi 0, %s244
      %s246 = sphi 0, %s244
      %s247 = sphi 0, %s246
      %s261 = sphi 0, %s247
      %s265 = sphi 0, %s265
      %s267 = sphi 0, %s265
      %s268 = sphi 0, %s267
      %s282 = sphi 0, %s268
      %s286 = sphi 0, %s286
      %s288 = sphi 0, %s286
      %s289 = sphi 0, %s288
      %s303 = sphi 0, %s289
      %s307 = sphi 0, %s307
      %s309 = sphi 0, %s307
      %s310 = sphi 0, %s309
      %s324 = sphi 0, %s310
      %s328 = sphi 0, %s328
      %s330 = sphi 0, %s328
      %s331 = sphi 0, %s330
      %s345 = sphi 0, %s331
      %s351 = sphi 0, %s353
      %s354 = sphi 0, %s351
      %s355 = sphi 0, %s354
      %s371 = sphi 0, %s355
    $region4: #{dilated_conv_encoder_forward.1} parent=1 // loop_header_branch
      %24 = sbr.rel (%p22) target = $region8
    $region5: #{dilated_conv_encoder_forward.1} parent=1 // loop_body
      %s26 = ssub.s32 %s21, 1
      %s27 = ssub.s32 %s21, 2
      %s28 = sadd.s32 %s21, 1
      %s29 = ssub.s32 %s21, %s28
      %p30 = scmp.eq.s32.totalorder %s29, 0
      %s32 = sadd.s32 %s31, 1
      %s33 = scalar_select %p30, %s31, %s32
      %p36 = pneg %p30
      %p37 = scmp.eq.s32.totalorder %s21, 1
      %p38 = por %p36, %p37
      %p39 = scmp.ne.s32.totalorder %s31, %s34
      %p40 = scmp.eq.s32.totalorder %s21, 0
      %p41 = por %p39, %p40
      %p42 = scmp.ne.s32.totalorder %s31, %s34
      %p43 = scmp.eq.s32.totalorder %s26, 1
      %p44 = por %p42, %p43
      %p45 = scmp.ne.s32.totalorder %s34, %s35
      %p46 = scmp.eq.s32.totalorder %s26, 0
      %p47 = por %p45, %p46
      %p48 = scmp.ne.s32.totalorder %s34, %s35
      %p49 = scmp.eq.s32.totalorder %s27, 1
      %p50 = por %p48, %p49
      %p52 = scmp.ne.s32.totalorder %s35, %s51
      %p53 = scmp.eq.s32.totalorder %s27, 0
      %p54 = por %p52, %p53
      %s56 = sadd.s32 %s55, 1
      %p59 = scmp.eq.s32.totalorder %s21, 1
      %p60 = scmp.ne.s32.totalorder %s55, %s57
      %p61 = scmp.eq.s32.totalorder %s21, 0
      %p62 = por %p60, %p61
      %p63 = scmp.ne.s32.totalorder %s55, %s57
      %p64 = scmp.eq.s32.totalorder %s26, 1
      %p65 = por %p63, %p64
      %p66 = scmp.ne.s32.totalorder %s57, %s58
      %p67 = scmp.eq.s32.totalorder %s26, 0
      %p68 = por %p66, %p67
      %p69 = scmp.ne.s32.totalorder %s57, %s58
      %p70 = scmp.eq.s32.totalorder %s27, 1
      %p71 = por %p69, %p70
      %p73 = scmp.ne.s32.totalorder %s58, %s72
      %p74 = scmp.eq.s32.totalorder %s27, 0
      %p75 = por %p73, %p74
      %s77 = sadd.s32 %s76, 1
      %p80 = scmp.eq.s32.totalorder %s21, 1
      %p81 = scmp.ne.s32.totalorder %s76, %s78
      %p82 = scmp.eq.s32.totalorder %s21, 0
      %p83 = por %p81, %p82
      %p84 = scmp.ne.s32.totalorder %s76, %s78
      %p85 = scmp.eq.s32.totalorder %s26, 1
      %p86 = por %p84, %p85
      %p87 = scmp.ne.s32.totalorder %s78, %s79
      %p88 = scmp.eq.s32.totalorder %s26, 0
      %p89 = por %p87, %p88
      %p90 = scmp.ne.s32.totalorder %s78, %s79
      %p91 = scmp.eq.s32.totalorder %s27, 1
      %p92 = por %p90, %p91
      %p94 = scmp.ne.s32.totalorder %s79, %s93
      %p95 = scmp.eq.s32.totalorder %s27, 0
      %p96 = por %p94, %p95
      %s98 = sadd.s32 %s97, 1
      %p101 = scmp.eq.s32.totalorder %s21, 1
      %p102 = scmp.ne.s32.totalorder %s97, %s99
      %p103 = scmp.eq.s32.totalorder %s21, 0
      %p104 = por %p102, %p103
      %p105 = scmp.ne.s32.totalorder %s97, %s99
      %p106 = scmp.eq.s32.totalorder %s26, 1
      %p107 = por %p105, %p106
      %p108 = scmp.ne.s32.totalorder %s99, %s100
      %p109 = scmp.eq.s32.totalorder %s26, 0
      %p110 = por %p108, %p109
      %p111 = scmp.ne.s32.totalorder %s99, %s100
      %p112 = scmp.eq.s32.totalorder %s27, 1
      %p113 = por %p111, %p112
      %p115 = scmp.ne.s32.totalorder %s100, %s114
      %p116 = scmp.eq.s32.totalorder %s27, 0
      %p117 = por %p115, %p116
      %s119 = sadd.s32 %s118, 1
      %p122 = scmp.eq.s32.totalorder %s21, 1
      %p123 = scmp.ne.s32.totalorder %s118, %s120
      %p124 = scmp.eq.s32.totalorder %s21, 0
      %p125 = por %p123, %p124
      %p126 = scmp.ne.s32.totalorder %s118, %s120
      %p127 = scmp.eq.s32.totalorder %s26, 1
      %p128 = por %p126, %p127
      %p129 = scmp.ne.s32.totalorder %s120, %s121
      %p130 = scmp.eq.s32.totalorder %s26, 0
      %p131 = por %p129, %p130
      %p132 = scmp.ne.s32.totalorder %s120, %s121
      %p133 = scmp.eq.s32.totalorder %s27, 1
      %p134 = por %p132, %p133
      %p136 = scmp.ne.s32.totalorder %s121, %s135
      %p137 = scmp.eq.s32.totalorder %s27, 0
      %p138 = por %p136, %p137
      %s140 = sadd.s32 %s139, 1
      %p143 = scmp.eq.s32.totalorder %s21, 1
      %p144 = scmp.ne.s32.totalorder %s139, %s141
      %p145 = scmp.eq.s32.totalorder %s21, 0
      %p146 = por %p144, %p145
      %p147 = scmp.ne.s32.totalorder %s139, %s141
      %p148 = scmp.eq.s32.totalorder %s26, 1
      %p149 = por %p147, %p148
      %p150 = scmp.ne.s32.totalorder %s141, %s142
      %p151 = scmp.eq.s32.totalorder %s26, 0
      %p152 = por %p150, %p151
      %p153 = scmp.ne.s32.totalorder %s141, %s142
      %p154 = scmp.eq.s32.totalorder %s27, 1
      %p155 = por %p153, %p154
      %p157 = scmp.ne.s32.totalorder %s142, %s156
      %p158 = scmp.eq.s32.totalorder %s27, 0
      %p159 = por %p157, %p158
      %s161 = sadd.s32 %s160, 1
      %p164 = scmp.eq.s32.totalorder %s21, 1
      %p165 = scmp.ne.s32.totalorder %s160, %s162
      %p166 = scmp.eq.s32.totalorder %s21, 0
      %p167 = por %p165, %p166
      %p168 = scmp.ne.s32.totalorder %s160, %s162
      %p169 = scmp.eq.s32.totalorder %s26, 1
      %p170 = por %p168, %p169
      %p171 = scmp.ne.s32.totalorder %s162, %s163
      %p172 = scmp.eq.s32.totalorder %s26, 0
      %p173 = por %p171, %p172
      %p174 = scmp.ne.s32.totalorder %s162, %s163
      %p175 = scmp.eq.s32.totalorder %s27, 1
      %p176 = por %p174, %p175
      %p178 = scmp.ne.s32.totalorder %s163, %s177
      %p179 = scmp.eq.s32.totalorder %s27, 0
      %p180 = por %p178, %p179
      %s182 = sadd.s32 %s181, 1
      %p185 = scmp.eq.s32.totalorder %s21, 1
      %p186 = scmp.ne.s32.totalorder %s181, %s183
      %p187 = scmp.eq.s32.totalorder %s21, 0
      %p188 = por %p186, %p187
      %p189 = scmp.ne.s32.totalorder %s181, %s183
      %p190 = scmp.eq.s32.totalorder %s26, 1
      %p191 = por %p189, %p190
      %p192 = scmp.ne.s32.totalorder %s183, %s184
      %p193 = scmp.eq.s32.totalorder %s26, 0
      %p194 = por %p192, %p193
      %p195 = scmp.ne.s32.totalorder %s183, %s184
      %p196 = scmp.eq.s32.totalorder %s27, 1
      %p197 = por %p195, %p196
      %p199 = scmp.ne.s32.totalorder %s184, %s198
      %p200 = scmp.eq.s32.totalorder %s27, 0
      %p201 = por %p199, %p200
      %s203 = sadd.s32 %s202, 1
      %p206 = scmp.eq.s32.totalorder %s21, 1
      %p207 = scmp.ne.s32.totalorder %s202, %s204
      %p208 = scmp.eq.s32.totalorder %s21, 0
      %p209 = por %p207, %p208
      %p210 = scmp.ne.s32.totalorder %s202, %s204
      %p211 = scmp.eq.s32.totalorder %s26, 1
      %p212 = por %p210, %p211
      %p213 = scmp.ne.s32.totalorder %s204, %s205
      %p214 = scmp.eq.s32.totalorder %s26, 0
      %p215 = por %p213, %p214
      %p216 = scmp.ne.s32.totalorder %s204, %s205
      %p217 = scmp.eq.s32.totalorder %s27, 1
      %p218 = por %p216, %p217
      %p220 = scmp.ne.s32.totalorder %s205, %s219
      %p221 = scmp.eq.s32.totalorder %s27, 0
      %p222 = por %p220, %p221
      %s224 = sadd.s32 %s223, 1
      %p227 = scmp.eq.s32.totalorder %s21, 1
      %p228 = scmp.ne.s32.totalorder %s223, %s225
      %p229 = scmp.eq.s32.totalorder %s21, 0
      %p230 = por %p228, %p229
      %p231 = scmp.ne.s32.totalorder %s223, %s225
      %p232 = scmp.eq.s32.totalorder %s26, 1
      %p233 = por %p231, %p232
      %p234 = scmp.ne.s32.totalorder %s225, %s226
      %p235 = scmp.eq.s32.totalorder %s26, 0
      %p236 = por %p234, %p235
      %p237 = scmp.ne.s32.totalorder %s225, %s226
      %p238 = scmp.eq.s32.totalorder %s27, 1
      %p239 = por %p237, %p238
      %p241 = scmp.ne.s32.totalorder %s226, %s240
      %p242 = scmp.eq.s32.totalorder %s27, 0
      %p243 = por %p241, %p242
      %s245 = sadd.s32 %s244, 1
      %p248 = scmp.eq.s32.totalorder %s21, 1
      %p249 = scmp.ne.s32.totalorder %s244, %s246
      %p250 = scmp.eq.s32.totalorder %s21, 0
      %p251 = por %p249, %p250
      %p252 = scmp.ne.s32.totalorder %s244, %s246
      %p253 = scmp.eq.s32.totalorder %s26, 1
      %p254 = por %p252, %p253
      %p255 = scmp.ne.s32.totalorder %s246, %s247
      %p256 = scmp.eq.s32.totalorder %s26, 0
      %p257 = por %p255, %p256
      %p258 = scmp.ne.s32.totalorder %s246, %s247
      %p259 = scmp.eq.s32.totalorder %s27, 1
      %p260 = por %p258, %p259
      %p262 = scmp.ne.s32.totalorder %s247, %s261
      %p263 = scmp.eq.s32.totalorder %s27, 0
      %p264 = por %p262, %p263
      %s266 = sadd.s32 %s265, 1
      %p269 = scmp.eq.s32.totalorder %s21, 1
      %p270 = scmp.ne.s32.totalorder %s265, %s267
      %p271 = scmp.eq.s32.totalorder %s21, 0
      %p272 = por %p270, %p271
      %p273 = scmp.ne.s32.totalorder %s265, %s267
      %p274 = scmp.eq.s32.totalorder %s26, 1
      %p275 = por %p273, %p274
      %p276 = scmp.ne.s32.totalorder %s267, %s268
      %p277 = scmp.eq.s32.totalorder %s26, 0
      %p278 = por %p276, %p277
      %p279 = scmp.ne.s32.totalorder %s267, %s268
      %p280 = scmp.eq.s32.totalorder %s27, 1
      %p281 = por %p279, %p280
      %p283 = scmp.ne.s32.totalorder %s268, %s282
      %p284 = scmp.eq.s32.totalorder %s27, 0
      %p285 = por %p283, %p284
      %s287 = sadd.s32 %s286, 1
      %p290 = scmp.eq.s32.totalorder %s21, 1
      %p291 = scmp.ne.s32.totalorder %s286, %s288
      %p292 = scmp.eq.s32.totalorder %s21, 0
      %p293 = por %p291, %p292
      %p294 = scmp.ne.s32.totalorder %s286, %s288
      %p295 = scmp.eq.s32.totalorder %s26, 1
      %p296 = por %p294, %p295
      %p297 = scmp.ne.s32.totalorder %s288, %s289
      %p298 = scmp.eq.s32.totalorder %s26, 0
      %p299 = por %p297, %p298
      %p300 = scmp.ne.s32.totalorder %s288, %s289
      %p301 = scmp.eq.s32.totalorder %s27, 1
      %p302 = por %p300, %p301
      %p304 = scmp.ne.s32.totalorder %s289, %s303
      %p305 = scmp.eq.s32.totalorder %s27, 0
      %p306 = por %p304, %p305
      %s308 = sadd.s32 %s307, 1
      %p311 = scmp.eq.s32.totalorder %s21, 1
      %p312 = scmp.ne.s32.totalorder %s307, %s309
      %p313 = scmp.eq.s32.totalorder %s21, 0
      %p314 = por %p312, %p313
      %p315 = scmp.ne.s32.totalorder %s307, %s309
      %p316 = scmp.eq.s32.totalorder %s26, 1
      %p317 = por %p315, %p316
      %p318 = scmp.ne.s32.totalorder %s309, %s310
      %p319 = scmp.eq.s32.totalorder %s26, 0
      %p320 = por %p318, %p319
      %p321 = scmp.ne.s32.totalorder %s309, %s310
      %p322 = scmp.eq.s32.totalorder %s27, 1
      %p323 = por %p321, %p322
      %p325 = scmp.ne.s32.totalorder %s310, %s324
      %p326 = scmp.eq.s32.totalorder %s27, 0
      %p327 = por %p325, %p326
      %s329 = sadd.s32 %s328, 1
      %p332 = scmp.eq.s32.totalorder %s21, 1
      %p333 = scmp.ne.s32.totalorder %s328, %s330
      %p334 = scmp.eq.s32.totalorder %s21, 0
      %p335 = por %p333, %p334
      %p336 = scmp.ne.s32.totalorder %s328, %s330
      %p337 = scmp.eq.s32.totalorder %s26, 1
      %p338 = por %p336, %p337
      %p339 = scmp.ne.s32.totalorder %s330, %s331
      %p340 = scmp.eq.s32.totalorder %s26, 0
      %p341 = por %p339, %p340
      %p342 = scmp.ne.s32.totalorder %s330, %s331
      %p343 = scmp.eq.s32.totalorder %s27, 1
      %p344 = por %p342, %p343
      %p346 = scmp.ne.s32.totalorder %s331, %s345
      %p347 = scmp.eq.s32.totalorder %s27, 0
      %p348 = por %p346, %p347
      %s349 = ssub.s32 %s21, %s28
      %p350 = scmp.eq.s32.totalorder %s349, 0
      %s352 = sadd.s32 %s351, 1
      %s353 = scalar_select %p350, %s351, %s352
      %p356 = pneg %p350
      %p357 = scmp.eq.s32.totalorder %s21, 1
      %p358 = por %p356, %p357
      %p359 = scmp.ne.s32.totalorder %s351, %s354
      %p360 = scmp.eq.s32.totalorder %s21, 0
      %p361 = por %p359, %p360
      %p362 = scmp.ne.s32.totalorder %s351, %s354
      %p363 = scmp.eq.s32.totalorder %s26, 1
      %p364 = por %p362, %p363
      %p365 = scmp.ne.s32.totalorder %s354, %s355
      %p366 = scmp.eq.s32.totalorder %s26, 0
      %p367 = por %p365, %p366
      %p368 = scmp.ne.s32.totalorder %s354, %s355
      %p369 = scmp.eq.s32.totalorder %s27, 1
      %p370 = por %p368, %p369
      %p372 = scmp.ne.s32.totalorder %s355, %s371
      %p373 = scmp.eq.s32.totalorder %s27, 0
      %p374 = por %p372, %p373
      %p375 = scmp.le.s32.totalorder 1, %s21
      %p376 = scmp.lt.s32.totalorder %s21, 3
      %p377 = pnand %p375, %p376
      %p378 = pneg %p377
      // Predicated region
      $region9: #{dilated_conv_encoder_forward.1} parent=5 // pred_check
        _
      $region10: #{dilated_conv_encoder_forward.1} parent=5 // pred_check_branch
        %380 = sbr.rel (%p377) target = $region12
      $region11: #{dilated_conv_encoder_forward.1} parent=5 // pred_region
        %s381 = ssub.s32 %s21, 1
        // Predicated region
        $region13: #{dilated_conv_encoder_forward.1} parent=11 // pred_check
          %p382 = pneg %p68
        $region14: #{dilated_conv_encoder_forward.1} parent=11 // pred_check_branch
          %384 = sbr.rel (%p382) target = $region16
        $region15: #{dilated_conv_encoder_forward.1} parent=11 // pred_region
          _
        $region16: #{dilated_conv_encoder_forward.1} parent=11 // pred_fallthru
          _
        // Predicated region
        $region17: #{dilated_conv_encoder_forward.1} parent=11 // pred_check
          %p385 = pneg %p89
        $region18: #{dilated_conv_encoder_forward.1} parent=11 // pred_check_branch
          %387 = sbr.rel (%p385) target = $region20
        $region19: #{dilated_conv_encoder_forward.1} parent=11 // pred_region
          _
        $region20: #{dilated_conv_encoder_forward.1} parent=11 // pred_fallthru
          _
        // Predicated region
        $region21: #{dilated_conv_encoder_forward.1} parent=11 // pred_check
          %p388 = pneg %p110
        $region22: #{dilated_conv_encoder_forward.1} parent=11 // pred_check_branch
          %390 = sbr.rel (%p388) target = $region24
        $region23: #{dilated_conv_encoder_forward.1} parent=11 // pred_region
          _
        $region24: #{dilated_conv_encoder_forward.1} parent=11 // pred_fallthru
          _
        // Predicated region
        $region25: #{dilated_conv_encoder_forward.1} parent=11 // pred_check
          %p391 = pneg %p131
        $region26: #{dilated_conv_encoder_forward.1} parent=11 // pred_check_branch
          %393 = sbr.rel (%p391) target = $region28
        $region27: #{dilated_conv_encoder_forward.1} parent=11 // pred_region
          _
        $region28: #{dilated_conv_encoder_forward.1} parent=11 // pred_fallthru
          _
        // Predicated region
        $region29: #{dilated_conv_encoder_forward.1} parent=11 // pred_check
          %p394 = pneg %p152
        $region30: #{dilated_conv_encoder_forward.1} parent=11 // pred_check_branch
          %396 = sbr.rel (%p394) target = $region32
        $region31: #{dilated_conv_encoder_forward.1} parent=11 // pred_region
          _
        $region32: #{dilated_conv_encoder_forward.1} parent=11 // pred_fallthru
          _
        // Predicated region
        $region33: #{dilated_conv_encoder_forward.1} parent=11 // pred_check
          %p397 = pneg %p173
        $region34: #{dilated_conv_encoder_forward.1} parent=11 // pred_check_branch
          %399 = sbr.rel (%p397) target = $region36
        $region35: #{dilated_conv_encoder_forward.1} parent=11 // pred_region
          _
        $region36: #{dilated_conv_encoder_forward.1} parent=11 // pred_fallthru
          _
        // Predicated region
        $region37: #{dilated_conv_encoder_forward.1} parent=11 // pred_check
          %p400 = pneg %p194
        $region38: #{dilated_conv_encoder_forward.1} parent=11 // pred_check_branch
          %402 = sbr.rel (%p400) target = $region40
        $region39: #{dilated_conv_encoder_forward.1} parent=11 // pred_region
          _
        $region40: #{dilated_conv_encoder_forward.1} parent=11 // pred_fallthru
          _
        // Predicated region
        $region41: #{dilated_conv_encoder_forward.1} parent=11 // pred_check
          %p403 = pneg %p215
        $region42: #{dilated_conv_encoder_forward.1} parent=11 // pred_check_branch
          %405 = sbr.rel (%p403) target = $region44
        $region43: #{dilated_conv_encoder_forward.1} parent=11 // pred_region
          _
        $region44: #{dilated_conv_encoder_forward.1} parent=11 // pred_fallthru
          _
        // Predicated region
        $region45: #{dilated_conv_encoder_forward.1} parent=11 // pred_check
          %p406 = pneg %p236
        $region46: #{dilated_conv_encoder_forward.1} parent=11 // pred_check_branch
          %408 = sbr.rel (%p406) target = $region48
        $region47: #{dilated_conv_encoder_forward.1} parent=11 // pred_region
          _
        $region48: #{dilated_conv_encoder_forward.1} parent=11 // pred_fallthru
          _
        // Predicated region
        $region49: #{dilated_conv_encoder_forward.1} parent=11 // pred_check
          %p409 = pneg %p257
        $region50: #{dilated_conv_encoder_forward.1} parent=11 // pred_check_branch
          %411 = sbr.rel (%p409) target = $region52
        $region51: #{dilated_conv_encoder_forward.1} parent=11 // pred_region
          _
        $region52: #{dilated_conv_encoder_forward.1} parent=11 // pred_fallthru
          _
        // Predicated region
        $region53: #{dilated_conv_encoder_forward.1} parent=11 // pred_check
          %p412 = pneg %p278
        $region54: #{dilated_conv_encoder_forward.1} parent=11 // pred_check_branch
          %414 = sbr.rel (%p412) target = $region56
        $region55: #{dilated_conv_encoder_forward.1} parent=11 // pred_region
          _
        $region56: #{dilated_conv_encoder_forward.1} parent=11 // pred_fallthru
          _
        // Predicated region
        $region57: #{dilated_conv_encoder_forward.1} parent=11 // pred_check
          %p415 = pneg %p299
        $region58: #{dilated_conv_encoder_forward.1} parent=11 // pred_check_branch
          %417 = sbr.rel (%p415) target = $region60
        $region59: #{dilated_conv_encoder_forward.1} parent=11 // pred_region
          _
        $region60: #{dilated_conv_encoder_forward.1} parent=11 // pred_fallthru
          _
        // Predicated region
        $region61: #{dilated_conv_encoder_forward.1} parent=11 // pred_check
          %p418 = pneg %p320
        $region62: #{dilated_conv_encoder_forward.1} parent=11 // pred_check_branch
          %420 = sbr.rel (%p418) target = $region64
        $region63: #{dilated_conv_encoder_forward.1} parent=11 // pred_region
          _
        $region64: #{dilated_conv_encoder_forward.1} parent=11 // pred_fallthru
          _
        // Predicated region
        $region65: #{dilated_conv_encoder_forward.1} parent=11 // pred_check
          %p421 = pneg %p341
        $region66: #{dilated_conv_encoder_forward.1} parent=11 // pred_check_branch
          %423 = sbr.rel (%p421) target = $region68
        $region67: #{dilated_conv_encoder_forward.1} parent=11 // pred_region
          _
        $region68: #{dilated_conv_encoder_forward.1} parent=11 // pred_fallthru
          _
      $region12: #{dilated_conv_encoder_forward.1} parent=5 // pred_fallthru
        _
      %p424 = scmp.lt.s32.totalorder %s21, 2
      // Predicated region
      $region69: #{dilated_conv_encoder_forward.1} parent=5 // pred_check
        %p425 = pneg %p424
      $region70: #{dilated_conv_encoder_forward.1} parent=5 // pred_check_branch
        %427 = sbr.rel (%p425) target = $region72
      $region71: #{dilated_conv_encoder_forward.1} parent=5 // pred_region
        // Predicated region
        $region73: #{dilated_conv_encoder_forward.1} parent=71 // pred_check
          %p428 = pneg %p41
        $region74: #{dilated_conv_encoder_forward.1} parent=71 // pred_check_branch
          %430 = sbr.rel (%p428) target = $region76
        $region75: #{dilated_conv_encoder_forward.1} parent=71 // pred_region
          %s431 = smul.u32 2, %s21
          %p432 = scmp.lt.s32.totalorder %s431, 3
          %s433 = scalar_select %p432, %s431, 3
          %s434 = smul.addr %s433, 8
          %s435 = scalar_lea.vmem %s0, %s434
          %s436 = smul.u32 2, %s21
        $region76: #{dilated_conv_encoder_forward.1} parent=71 // pred_fallthru
          _
      $region72: #{dilated_conv_encoder_forward.1} parent=5 // pred_fallthru
        _
      %p437 = scmp.le.s32.totalorder 1, %s21
      %p438 = scmp.lt.s32.totalorder %s21, 3
      %p439 = pnand %p437, %p438
      %p440 = pneg %p439
      // Predicated region
      $region77: #{dilated_conv_encoder_forward.1} parent=5 // pred_check
        _
      $region78: #{dilated_conv_encoder_forward.1} parent=5 // pred_check_branch
        %442 = sbr.rel (%p439) target = $region80
      $region79: #{dilated_conv_encoder_forward.1} parent=5 // pred_region
        %s443 = ssub.s32 %s21, 1
        %s444 = smul.u32 2, %s26
        %p445 = scmp.lt.s32.totalorder %s444, 3
        %s446 = scalar_select %p445, %s444, 3
        %s447 = smul.addr %s446, 8
        %s448 = scalar_lea.vmem %s0, %s447
        %p449 = pneg %p47
        %p450 = pneg %p44
        %p451 = pneg %p68
        %p452 = pneg %p65
        %p453 = pneg %p89
        %p454 = pneg %p86
        %p455 = pneg %p110
        %p456 = pneg %p107
        %p457 = pneg %p131
        %p458 = pneg %p128
        %p459 = pneg %p152
        %p460 = pneg %p149
        %p461 = pneg %p173
        %p462 = pneg %p170
        %p463 = pneg %p194
        %p464 = pneg %p191
        %p465 = pneg %p215
        %p466 = pneg %p212
        %p467 = pneg %p236
        %p468 = pneg %p233
        %p469 = pneg %p257
        %p470 = pneg %p254
        %p471 = pneg %p278
        %p472 = pneg %p275
        %p473 = pneg %p299
        %p474 = pneg %p296
        %p475 = pneg %p320
        %p476 = pneg %p317
        %p477 = pneg %p341
        %p478 = pneg %p338
        %p479 = pneg %p367
        %p480 = pneg %p364
        %s481 = sand.u32 %s354, 1
        %s482 = sand.u32 %s354, 1
        %s483 = smul.addr %s482, 32
        %s484 = scalar_lea.vmem [#allocation2], %s483
        %s485 = smul.u32 2, %s26
        %p486 = scmp.lt.s32.totalorder %s485, 3
        %s487 = scalar_select %p486, %s485, 3
        %s488 = smul.addr %s487, 8
        %s489 = scalar_lea.vmem %s0, %s488
        %s490 = smul.u32 2, %s26
        %s491 = smul.u32 2, %s26
        %v492 = vlaneseq
        %v493 = vand.u32 %v492, 127
        %v494 = vadd.s32 %v493, 128
        %vm495 = vcmp.lt.s32.totalorder %v493, 0
        %v496 = vsub.s32 0, %v493
        %v497 = vsel %vm495, %v496, %v493
        %v498 = vshrl.u32 %v497, 6
        %v499 = vand.u32 %v497, 63
        %v500 = vsub.s32 0, %v499
        %v501 = vsel %vm495, %v500, %v499
        %vm502 = vcmp.lt.s32.totalorder %v494, 0
        %v503 = vsub.s32 0, %v494
        %v504 = vsel %vm502, %v503, %v494
        %v505 = vshrl.u32 %v504, 6
        %v506 = vand.u32 %v504, 63
        %v507 = vsub.s32 0, %v506
        %v508 = vsel %vm502, %v507, %v506
        %vm509 = vcmp.ne.s32.totalorder %v501, 0
        %vm510 = vcmp.ne.s32.totalorder %v508, 0
        %vm511 = vcmp.lt.s32.totalorder %v501, 0
        %vm512 = vcmp.lt.s32.totalorder %v508, 0
        %vm513 = vmand %vm511, %vm509
        %vm514 = vmand %vm512, %vm510
        %v515 = vadd.s32 %v501, 64
        %v516 = vadd.s32 %v508, 64
        %v517 = vsel %vm513, %v515, %v501
        %v518 = vsel %vm514, %v516, %v508
        %v519 = vld [vmem:[%s489] sm:$0xff]
        %v520 = vld [vmem:[%s489 + $0x8] sm:$0xff]
        %v521 = vmul.f32 %v519, 0.5
        %v522 = vmul.f32 %v520, 0.5
        %v523 = vmul.f32 %v519, 0.70710677
        %v524 = vmul.f32 %v520, 0.70710677
        %vm525 = vcmp.ge.f32.partialorder %v523, 0.0
        %vm526 = vcmp.ge.f32.partialorder %v524, 0.0
        %v527 = vsel %vm525, 1.0, -1.0
        %v528 = vsel %vm526, 1.0, -1.0
        %v529 = vand.u32 2147483647, %v523
        %v530 = vand.u32 2147483647, %v524
        %v531 = vmul.f32 %v529, 0.3275911
        %v532 = vmul.f32 %v530, 0.3275911
        %v533 = vadd.f32 %v531, 1.0
        %v534 = vadd.f32 %v532, 1.0
        %v535 = vrcp.pop %v533
        %v536 = vmul.f32 %v533, %v535
        %v537 = vsub.f32 1.0, %v536
        %v538 = vmul.f32 %v535, %v537
        %v539 = vadd.f32 %v535, %v538
        %vm540 = vweird.f32 %v533
        %vm541 = vweird.f32 %v535
        %vm542 = vmor %vm540, %vm541
        %v543 = vsel %vm542, %v535, %v539
        %v544 = vand.u32 2147483647, %v533
        %vm545 = vcmp.eq.f32.partialorder %v544, 8.507059e+37
        %v546 = vand.u32 %v533, 2147483648
        %v547 = vor.u32 1.1754944e-38, %v546
        %v548 = vsel %vm545, %v547, %v543
        %v549 = vmul.f32 1.0, %v548
        %v550 = vrcp.pop %v534
        %v551 = vmul.f32 %v534, %v550
        %v552 = vsub.f32 1.0, %v551
        %v553 = vmul.f32 %v550, %v552
        %v554 = vadd.f32 %v550, %v553
        %vm555 = vweird.f32 %v534
        %vm556 = vweird.f32 %v550
        %vm557 = vmor %vm555, %vm556
        %v558 = vsel %vm557, %v550, %v554
        %v559 = vand.u32 2147483647, %v534
        %vm560 = vcmp.eq.f32.partialorder %v559, 8.507059e+37
        %v561 = vand.u32 %v534, 2147483648
        %v562 = vor.u32 1.1754944e-38, %v561
        %v563 = vsel %vm560, %v562, %v558
        %v564 = vmul.f32 1.0, %v563
        %v565 = vmul.f32 %v549, 1.0614054
        %v566 = vmul.f32 %v564, 1.0614054
        %v567 = vadd.f32 %v565, -1.4531521
        %v568 = vadd.f32 %v566, -1.4531521
        %v569 = vmul.f32 %v567, %v549
        %v570 = vmul.f32 %v568, %v564
        %v571 = vadd.f32 %v569, 1.4214138
        %v572 = vadd.f32 %v570, 1.4214138
        %v573 = vmul.f32 %v571, %v549
        %v574 = vmul.f32 %v572, %v564
        %v575 = vadd.f32 %v573, -0.28449672
        %v576 = vadd.f32 %v574, -0.28449672
        %v577 = vmul.f32 %v575, %v549
        %v578 = vmul.f32 %v576, %v564
        %v579 = vadd.f32 %v577, 0.2548296
        %v580 = vadd.f32 %v578, 0.2548296
        %v581 = vmul.f32 %v579, %v549
        %v582 = vmul.f32 %v580, %v564
        %v583 = vsub.f32 0.0, %v529
        %v584 = vsub.f32 0.0, %v530
        %v585 = vmul.f32 %v583, %v529
        %v586 = vmul.f32 %v584, %v530
        %v587 = vmul.f32 %v585, 1.442695
        %v588 = vpow.pop %v587
        %v589 = vmul.f32 %v586, 1.442695
        %v590 = vpow.pop %v589
        %v591 = vmul.f32 %v581, %v588
        %v592 = vmul.f32 %v582, %v590
        %v593 = vsub.f32 1.0, %v591
        %v594 = vsub.f32 1.0, %v592
        %v595 = vmul.f32 %v527, %v593
        %v596 = vmul.f32 %v528, %v594
        %v597 = vadd.f32 %v595, 1.0
        %v598 = vadd.f32 %v596, 1.0
        %v599 = vmul.f32 %v521, %v597
        %v600 = vmul.f32 %v522, %v598
        %603 = vrot.lane.b32.xlu0 %v599, 1
        %v604 = vpop.permute.xlu0 %603
        %605 = vrot.lane.b32.xlu0 %v600, 1
        %v606 = vpop.permute.xlu0 %605
        %vm607 = vcmask 7168
        %v608 = vsel %vm607, %v604, %v606
        %v611 = vsel %vm607, 0.0, %v604
        %v612 = vadd.s32 %v517, 4294967295
        %v613 = vadd.s32 %v518, 4294967295
        %vm614 = vcmp.ge.s32.totalorder %v612, 0
        %vm615 = vcmp.ge.s32.totalorder %v613, 0
        %vm616 = vcmp.lt.s32.totalorder %v612, 64
        %vm617 = vcmp.lt.s32.totalorder %v613, 64
        %vm618 = vmand %vm614, %vm616
        %vm619 = vmand %vm615, %vm617
        %v620 = vsel %vm618, 1, 0
        %v621 = vsel %vm619, 1, 0
        %vm622 = vcmp.eq.s32.totalorder %v620, 1
        %vm623 = vcmp.eq.s32.totalorder %v621, 1
        %v624 = vsel %vm622, %v611, 0.0
        %v625 = vsel %vm623, %v608, 0.0
        %626 = vrot.lane.b32.xlu0 %v599, 127
        %v627 = vpop.permute.xlu0 %626
        %628 = vrot.lane.b32.xlu0 %v600, 127
        %v629 = vpop.permute.xlu0 %628
        %vm630 = vcmask 1039360
        %v631 = vsel %vm630, %v627, %v629
        %v634 = vsel %vm630, %v629, 0.0
        %v635 = vadd.s32 %v517, 1
        %v636 = vadd.s32 %v518, 1
        %vm637 = vcmp.ge.s32.totalorder %v635, 0
        %vm638 = vcmp.ge.s32.totalorder %v636, 0
        %vm639 = vcmp.lt.s32.totalorder %v635, 64
        %vm640 = vcmp.lt.s32.totalorder %v636, 64
        %vm641 = vmand %vm637, %vm639
        %vm642 = vmand %vm638, %vm640
        %v643 = vsel %vm641, 1, 0
        %v644 = vsel %vm642, 1, 0
        %vm645 = vcmp.eq.s32.totalorder %v643, 1
        %vm646 = vcmp.eq.s32.totalorder %v644, 1
        %v647 = vsel %vm645, %v631, 0.0
        %v648 = vsel %vm646, %v634, 0.0
        %v649 = vld [vmem:[%s1] sm:$0xff]
        %v650 = vld [vmem:[%s2] sm:$0xff]
        %652 = vset.pattern.permute.xlu0 0
        %653 = vperm.xlu0 %652, %v650
        %v654 = vpop.permute.xlu0 %653
        %vm656 = vcmask 195584
        %v658 = vsel %vm656, %v649, 0
        %660 = vmatpush.msra.mxu0 0.0
        %661 = vmatpush.msra.mxu0 0.0
        %662 = vmatpush.msra.mxu0 0.0
        %663 = vmatpush.msra.mxu0 0.0
        %664 = vmatpush.msra.mxu0 0.0
        %665 = vmatpush.msra.mxu0 0.0
        %666 = vmatpush.msra.mxu0 0.0
        %667 = vmatpush.msra.mxu0 0.0
        %668 = vmatpush.msra.mxu0 0.0
        %669 = vmatpush.msra.mxu0 0.0
        %670 = vmatpush.msra.mxu0 0.0
        %671 = vmatpush.msra.mxu0 0.0
        %672 = vmatpush.msra.mxu0 0.0
        %673 = vmatpush.msra.mxu0 %v647
        %674 = vmatpush.msra.mxu0 %v599
        %675 = vmatpush.msra.mxu0 %v624
        %676 = vmatmul.f32.gmra.mxu0 %v658
        %v677 = vpop.f32.mrf.mxu0
        %v678 = vadd.f32 %v654, %v677
        %679 = vdwg.mxu0
        %680 = vmatpush.msra.mxu0 0.0
        %681 = vmatpush.msra.mxu0 0.0
        %682 = vmatpush.msra.mxu0 0.0
        %683 = vmatpush.msra.mxu0 0.0
        %684 = vmatpush.msra.mxu0 0.0
        %685 = vmatpush.msra.mxu0 0.0
        %686 = vmatpush.msra.mxu0 0.0
        %687 = vmatpush.msra.mxu0 0.0
        %688 = vmatpush.msra.mxu0 0.0
        %689 = vmatpush.msra.mxu0 0.0
        %690 = vmatpush.msra.mxu0 0.0
        %691 = vmatpush.msra.mxu0 0.0
        %692 = vmatpush.msra.mxu0 0.0
        %693 = vmatpush.msra.mxu0 %v648
        %694 = vmatpush.msra.mxu0 %v600
        %695 = vmatpush.msra.mxu0 %v625
        %696 = vmatmul.f32.gmra.mxu0 %v658
        %v697 = vpop.f32.mrf.mxu0
        %v698 = vadd.f32 %v654, %v697
        %699 = vdwg.mxu0
        %v700 = vmul.f32 %v678, 0.5
        %v701 = vmul.f32 %v698, 0.5
        %v702 = vmul.f32 %v678, 0.70710677
        %v703 = vmul.f32 %v698, 0.70710677
        %vm704 = vcmp.ge.f32.partialorder %v702, 0.0
        %vm705 = vcmp.ge.f32.partialorder %v703, 0.0
        %v706 = vsel %vm704, 1.0, -1.0
        %v707 = vsel %vm705, 1.0, -1.0
        %v708 = vand.u32 2147483647, %v702
        %v709 = vand.u32 2147483647, %v703
        %v710 = vmul.f32 %v708, 0.3275911
        %v711 = vmul.f32 %v709, 0.3275911
        %v712 = vadd.f32 %v710, 1.0
        %v713 = vadd.f32 %v711, 1.0
        %v714 = vrcp.pop %v712
        %v715 = vmul.f32 %v712, %v714
        %v716 = vsub.f32 1.0, %v715
        %v717 = vmul.f32 %v714, %v716
        %v718 = vadd.f32 %v714, %v717
        %vm719 = vweird.f32 %v712
        %vm720 = vweird.f32 %v714
        %vm721 = vmor %vm719, %vm720
        %v722 = vsel %vm721, %v714, %v718
        %v723 = vand.u32 2147483647, %v712
        %vm724 = vcmp.eq.f32.partialorder %v723, 8.507059e+37
        %v725 = vand.u32 %v712, 2147483648
        %v726 = vor.u32 1.1754944e-38, %v725
        %v727 = vsel %vm724, %v726, %v722
        %v728 = vmul.f32 1.0, %v727
        %v729 = vrcp.pop %v713
        %v730 = vmul.f32 %v713, %v729
        %v731 = vsub.f32 1.0, %v730
        %v732 = vmul.f32 %v729, %v731
        %v733 = vadd.f32 %v729, %v732
        %vm734 = vweird.f32 %v713
        %vm735 = vweird.f32 %v729
        %vm736 = vmor %vm734, %vm735
        %v737 = vsel %vm736, %v729, %v733
        %v738 = vand.u32 2147483647, %v713
        %vm739 = vcmp.eq.f32.partialorder %v738, 8.507059e+37
        %v740 = vand.u32 %v713, 2147483648
        %v741 = vor.u32 1.1754944e-38, %v740
        %v742 = vsel %vm739, %v741, %v737
        %v743 = vmul.f32 1.0, %v742
        %v744 = vmul.f32 %v728, 1.0614054
        %v745 = vmul.f32 %v743, 1.0614054
        %v746 = vadd.f32 %v744, -1.4531521
        %v747 = vadd.f32 %v745, -1.4531521
        %v748 = vmul.f32 %v746, %v728
        %v749 = vmul.f32 %v747, %v743
        %v750 = vadd.f32 %v748, 1.4214138
        %v751 = vadd.f32 %v749, 1.4214138
        %v752 = vmul.f32 %v750, %v728
        %v753 = vmul.f32 %v751, %v743
        %v754 = vadd.f32 %v752, -0.28449672
        %v755 = vadd.f32 %v753, -0.28449672
        %v756 = vmul.f32 %v754, %v728
        %v757 = vmul.f32 %v755, %v743
        %v758 = vadd.f32 %v756, 0.2548296
        %v759 = vadd.f32 %v757, 0.2548296
        %v760 = vmul.f32 %v758, %v728
        %v761 = vmul.f32 %v759, %v743
        %v762 = vsub.f32 0.0, %v708
        %v763 = vsub.f32 0.0, %v709
        %v764 = vmul.f32 %v762, %v708
        %v765 = vmul.f32 %v763, %v709
        %v766 = vmul.f32 %v764, 1.442695
        %v767 = vpow.pop %v766
        %v768 = vmul.f32 %v765, 1.442695
        %v769 = vpow.pop %v768
        %v770 = vmul.f32 %v760, %v767
        %v771 = vmul.f32 %v761, %v769
        %v772 = vsub.f32 1.0, %v770
        %v773 = vsub.f32 1.0, %v771
        %v774 = vmul.f32 %v706, %v772
        %v775 = vmul.f32 %v707, %v773
        %v776 = vadd.f32 %v774, 1.0
        %v777 = vadd.f32 %v775, 1.0
        %v778 = vmul.f32 %v700, %v776
        %v779 = vmul.f32 %v701, %v777
        %782 = vrot.lane.b32.xlu0 %v778, 1
        %v783 = vpop.permute.xlu0 %782
        %784 = vrot.lane.b32.xlu0 %v779, 1
        %v785 = vpop.permute.xlu0 %784
        %v786 = vsel %vm607, %v783, %v785
        %v789 = vsel %vm607, 0.0, %v783
        %v790 = vsel %vm622, %v789, 0.0
        %v791 = vsel %vm623, %v786, 0.0
        %792 = vrot.lane.b32.xlu0 %v778, 127
        %v793 = vpop.permute.xlu0 %792
        %794 = vrot.lane.b32.xlu0 %v779, 127
        %v795 = vpop.permute.xlu0 %794
        %v796 = vsel %vm630, %v793, %v795
        %v799 = vsel %vm630, %v795, 0.0
        %v800 = vsel %vm645, %v796, 0.0
        %v801 = vsel %vm646, %v799, 0.0
        %v802 = vld [vmem:[%s3] sm:$0xff]
        %v803 = vld [vmem:[%s4] sm:$0xff]
        %805 = vset.pattern.permute.xlu0 0
        %806 = vperm.xlu0 %805, %v803
        %v807 = vpop.permute.xlu0 %806
        %v810 = vsel %vm656, %v802, 0
        %812 = vmatpush.msra.mxu0 0.0
        %813 = vmatpush.msra.mxu0 0.0
        %814 = vmatpush.msra.mxu0 0.0
        %815 = vmatpush.msra.mxu0 0.0
        %816 = vmatpush.msra.mxu0 0.0
        %817 = vmatpush.msra.mxu0 0.0
        %818 = vmatpush.msra.mxu0 0.0
        %819 = vmatpush.msra.mxu0 0.0
        %820 = vmatpush.msra.mxu0 0.0
        %821 = vmatpush.msra.mxu0 0.0
        %822 = vmatpush.msra.mxu0 0.0
        %823 = vmatpush.msra.mxu0 0.0
        %824 = vmatpush.msra.mxu0 0.0
        %825 = vmatpush.msra.mxu0 %v800
        %826 = vmatpush.msra.mxu0 %v778
        %827 = vmatpush.msra.mxu0 %v790
        %828 = vmatmul.f32.gmra.mxu0 %v810
        %v829 = vpop.f32.mrf.mxu0
        %v830 = vadd.f32 %v807, %v829
        %831 = vdwg.mxu0
        %832 = vmatpush.msra.mxu0 0.0
        %833 = vmatpush.msra.mxu0 0.0
        %834 = vmatpush.msra.mxu0 0.0
        %835 = vmatpush.msra.mxu0 0.0
        %836 = vmatpush.msra.mxu0 0.0
        %837 = vmatpush.msra.mxu0 0.0
        %838 = vmatpush.msra.mxu0 0.0
        %839 = vmatpush.msra.mxu0 0.0
        %840 = vmatpush.msra.mxu0 0.0
        %841 = vmatpush.msra.mxu0 0.0
        %842 = vmatpush.msra.mxu0 0.0
        %843 = vmatpush.msra.mxu0 0.0
        %844 = vmatpush.msra.mxu0 0.0
        %845 = vmatpush.msra.mxu0 %v801
        %846 = vmatpush.msra.mxu0 %v779
        %847 = vmatpush.msra.mxu0 %v791
        %848 = vmatmul.f32.gmra.mxu0 %v810
        %v849 = vpop.f32.mrf.mxu0
        %v850 = vadd.f32 %v807, %v849
        %851 = vdwg.mxu0
        %v852 = vadd.f32 %v830, %v519
        %v853 = vadd.f32 %v850, %v520
        %v854 = vld [vmem:[%s9] sm:$0xff]
        %v855 = vld [vmem:[%s9 + $0x8] sm:$0xff]
        %v856 = vld [vmem:[%s10] sm:$0xff]
        %v857 = vld [vmem:[%s10 + $0x8] sm:$0xff]
        %859 = vset.pattern.permute.xlu0 0
        %860 = vperm.xlu0 %859, %v856
        %v861 = vpop.permute.xlu0 %860
        %864 = vset.pattern.permute.xlu0 0
        %865 = vperm.xlu0 %864, %v857
        %v866 = vpop.permute.xlu0 %865
        %vm868 = vcmask 64512
        %v870 = vsel %vm868, %v854, 0
        %v873 = vsel %vm868, %v855, 0
        %875 = vmatpush.msra.mxu0 0.0
        %876 = vmatpush.msra.mxu0 0.0
        %877 = vmatpush.msra.mxu0 0.0
        %878 = vmatpush.msra.mxu0 0.0
        %879 = vmatpush.msra.mxu0 0.0
        %880 = vmatpush.msra.mxu0 0.0
        %881 = vmatpush.msra.mxu0 0.0
        %882 = vmatpush.msra.mxu0 0.0
        %883 = vmatpush.msra.mxu0 0.0
        %884 = vmatpush.msra.mxu0 0.0
        %885 = vmatpush.msra.mxu0 0.0
        %886 = vmatpush.msra.mxu0 0.0
        %887 = vmatpush.msra.mxu0 0.0
        %888 = vmatpush.msra.mxu0 0.0
        %889 = vmatpush.msra.mxu0 0.0
        %890 = vmatpush.msra.mxu0 %v852
        %891 = vmatmul.f32.gmra.mxu0 %v870
        %v892 = vpop.f32.mrf.mxu0
        %v893 = vadd.f32 %v861, %v892
        %894 = vmatmul.f32.gmra.mxu0 %v873
        %v895 = vpop.f32.mrf.mxu0
        %v896 = vadd.f32 %v866, %v895
        %897 = vdwg.mxu0
        %898 = vmatpush.msra.mxu0 0.0
        %899 = vmatpush.msra.mxu0 0.0
        %900 = vmatpush.msra.mxu0 0.0
        %901 = vmatpush.msra.mxu0 0.0
        %902 = vmatpush.msra.mxu0 0.0
        %903 = vmatpush.msra.mxu0 0.0
        %904 = vmatpush.msra.mxu0 0.0
        %905 = vmatpush.msra.mxu0 0.0
        %906 = vmatpush.msra.mxu0 0.0
        %907 = vmatpush.msra.mxu0 0.0
        %908 = vmatpush.msra.mxu0 0.0
        %909 = vmatpush.msra.mxu0 0.0
        %910 = vmatpush.msra.mxu0 0.0
        %911 = vmatpush.msra.mxu0 0.0
        %912 = vmatpush.msra.mxu0 0.0
        %913 = vmatpush.msra.mxu0 %v853
        %914 = vmatmul.f32.gmra.mxu0 %v870
        %v915 = vpop.f32.mrf.mxu0
        %v916 = vadd.f32 %v861, %v915
        %917 = vmatmul.f32.gmra.mxu0 %v873
        %v918 = vpop.f32.mrf.mxu0
        %v919 = vadd.f32 %v866, %v918
        %920 = vdwg.mxu0
        %v921 = vmul.f32 %v852, 0.5
        %v922 = vmul.f32 %v853, 0.5
        %v923 = vmul.f32 %v852, 0.70710677
        %v924 = vmul.f32 %v853, 0.70710677
        %vm925 = vcmp.ge.f32.partialorder %v923, 0.0
        %vm926 = vcmp.ge.f32.partialorder %v924, 0.0
        %v927 = vsel %vm925, 1.0, -1.0
        %v928 = vsel %vm926, 1.0, -1.0
        %v929 = vand.u32 2147483647, %v923
        %v930 = vand.u32 2147483647, %v924
        %v931 = vmul.f32 %v929, 0.3275911
        %v932 = vmul.f32 %v930, 0.3275911
        %v933 = vadd.f32 %v931, 1.0
        %v934 = vadd.f32 %v932, 1.0
        %v935 = vrcp.pop %v933
        %v936 = vmul.f32 %v933, %v935
        %v937 = vsub.f32 1.0, %v936
        %v938 = vmul.f32 %v935, %v937
        %v939 = vadd.f32 %v935, %v938
        %vm940 = vweird.f32 %v933
        %vm941 = vweird.f32 %v935
        %vm942 = vmor %vm940, %vm941
        %v943 = vsel %vm942, %v935, %v939
        %v944 = vand.u32 2147483647, %v933
        %vm945 = vcmp.eq.f32.partialorder %v944, 8.507059e+37
        %v946 = vand.u32 %v933, 2147483648
        %v947 = vor.u32 1.1754944e-38, %v946
        %v948 = vsel %vm945, %v947, %v943
        %v949 = vmul.f32 1.0, %v948
        %v950 = vrcp.pop %v934
        %v951 = vmul.f32 %v934, %v950
        %v952 = vsub.f32 1.0, %v951
        %v953 = vmul.f32 %v950, %v952
        %v954 = vadd.f32 %v950, %v953
        %vm955 = vweird.f32 %v934
        %vm956 = vweird.f32 %v950
        %vm957 = vmor %vm955, %vm956
        %v958 = vsel %vm957, %v950, %v954
        %v959 = vand.u32 2147483647, %v934
        %vm960 = vcmp.eq.f32.partialorder %v959, 8.507059e+37
        %v961 = vand.u32 %v934, 2147483648
        %v962 = vor.u32 1.1754944e-38, %v961
        %v963 = vsel %vm960, %v962, %v958
        %v964 = vmul.f32 1.0, %v963
        %v965 = vmul.f32 %v949, 1.0614054
        %v966 = vmul.f32 %v964, 1.0614054
        %v967 = vadd.f32 %v965, -1.4531521
        %v968 = vadd.f32 %v966, -1.4531521
        %v969 = vmul.f32 %v967, %v949
        %v970 = vmul.f32 %v968, %v964
        %v971 = vadd.f32 %v969, 1.4214138
        %v972 = vadd.f32 %v970, 1.4214138
        %v973 = vmul.f32 %v971, %v949
        %v974 = vmul.f32 %v972, %v964
        %v975 = vadd.f32 %v973, -0.28449672
        %v976 = vadd.f32 %v974, -0.28449672
        %v977 = vmul.f32 %v975, %v949
        %v978 = vmul.f32 %v976, %v964
        %v979 = vadd.f32 %v977, 0.2548296
        %v980 = vadd.f32 %v978, 0.2548296
        %v981 = vmul.f32 %v979, %v949
        %v982 = vmul.f32 %v980, %v964
        %v983 = vsub.f32 0.0, %v929
        %v984 = vsub.f32 0.0, %v930
        %v985 = vmul.f32 %v983, %v929
        %v986 = vmul.f32 %v984, %v930
        %v987 = vmul.f32 %v985, 1.442695
        %v988 = vpow.pop %v987
        %v989 = vmul.f32 %v986, 1.442695
        %v990 = vpow.pop %v989
        %v991 = vmul.f32 %v981, %v988
        %v992 = vmul.f32 %v982, %v990
        %v993 = vsub.f32 1.0, %v991
        %v994 = vsub.f32 1.0, %v992
        %v995 = vmul.f32 %v927, %v993
        %v996 = vmul.f32 %v928, %v994
        %v997 = vadd.f32 %v995, 1.0
        %v998 = vadd.f32 %v996, 1.0
        %v999 = vmul.f32 %v921, %v997
        %v1000 = vmul.f32 %v922, %v998
        %1003 = vrot.lane.b32.xlu0 %v999, 2
        %v1004 = vpop.permute.xlu0 %1003
        %1005 = vrot.lane.b32.xlu0 %v1000, 2
        %v1006 = vpop.permute.xlu0 %1005
        %vm1007 = vcmask 15360
        %v1008 = vsel %vm1007, %v1004, %v1006
        %v1011 = vsel %vm1007, 0.0, %v1004
        %v1012 = vadd.s32 %v517, 4294967294
        %v1013 = vadd.s32 %v518, 4294967294
        %vm1014 = vcmp.ge.s32.totalorder %v1012, 0
        %vm1015 = vcmp.ge.s32.totalorder %v1013, 0
        %vm1016 = vcmp.lt.s32.totalorder %v1012, 64
        %vm1017 = vcmp.lt.s32.totalorder %v1013, 64
        %vm1018 = vmand %vm1014, %vm1016
        %vm1019 = vmand %vm1015, %vm1017
        %v1020 = vsel %vm1018, 1, 0
        %v1021 = vsel %vm1019, 1, 0
        %vm1022 = vcmp.eq.s32.totalorder %v1020, 1
        %vm1023 = vcmp.eq.s32.totalorder %v1021, 1
        %v1024 = vsel %vm1022, %v1011, 0.0
        %v1025 = vsel %vm1023, %v1008, 0.0
        %1026 = vrot.lane.b32.xlu0 %v999, 126
        %v1027 = vpop.permute.xlu0 %1026
        %1028 = vrot.lane.b32.xlu0 %v1000, 126
        %v1029 = vpop.permute.xlu0 %1028
        %vm1030 = vcmask 1031168
        %v1031 = vsel %vm1030, %v1027, %v1029
        %v1034 = vsel %vm1030, %v1029, 0.0
        %v1035 = vadd.s32 %v517, 2
        %v1036 = vadd.s32 %v518, 2
        %vm1037 = vcmp.ge.s32.totalorder %v1035, 0
        %vm1038 = vcmp.ge.s32.totalorder %v1036, 0
        %vm1039 = vcmp.lt.s32.totalorder %v1035, 64
        %vm1040 = vcmp.lt.s32.totalorder %v1036, 64
        %vm1041 = vmand %vm1037, %vm1039
        %vm1042 = vmand %vm1038, %vm1040
        %v1043 = vsel %vm1041, 1, 0
        %v1044 = vsel %vm1042, 1, 0
        %vm1045 = vcmp.eq.s32.totalorder %v1043, 1
        %vm1046 = vcmp.eq.s32.totalorder %v1044, 1
        %v1047 = vsel %vm1045, %v1031, 0.0
        %v1048 = vsel %vm1046, %v1034, 0.0
        %v1049 = vld [vmem:[%s5] sm:$0xff]
        %v1050 = vld [vmem:[%s5 + $0x8] sm:$0xff]
        %v1051 = vld [vmem:[%s6] sm:$0xff]
        %v1052 = vld [vmem:[%s6 + $0x8] sm:$0xff]
        %1054 = vset.pattern.permute.xlu0 0
        %1055 = vperm.xlu0 %1054, %v1051
        %v1056 = vpop.permute.xlu0 %1055
        %1059 = vset.pattern.permute.xlu0 0
        %1060 = vperm.xlu0 %1059, %v1052
        %v1061 = vpop.permute.xlu0 %1060
        %v1064 = vsel %vm656, %v1049, 0
        %v1067 = vsel %vm656, %v1050, 0
        %1069 = vmatpush.msra.mxu0 0.0
        %1070 = vmatpush.msra.mxu0 0.0
        %1071 = vmatpush.msra.mxu0 0.0
        %1072 = vmatpush.msra.mxu0 0.0
        %1073 = vmatpush.msra.mxu0 0.0
        %1074 = vmatpush.msra.mxu0 0.0
        %1075 = vmatpush.msra.mxu0 0.0
        %1076 = vmatpush.msra.mxu0 0.0
        %1077 = vmatpush.msra.mxu0 0.0
        %1078 = vmatpush.msra.mxu0 0.0
        %1079 = vmatpush.msra.mxu0 0.0
        %1080 = vmatpush.msra.mxu0 0.0
        %1081 = vmatpush.msra.mxu0 0.0
        %1082 = vmatpush.msra.mxu0 %v1047
        %1083 = vmatpush.msra.mxu0 %v999
        %1084 = vmatpush.msra.mxu0 %v1024
        %1085 = vmatmul.f32.gmra.mxu0 %v1064
        %v1086 = vpop.f32.mrf.mxu0
        %v1087 = vadd.f32 %v1056, %v1086
        %1088 = vmatmul.f32.gmra.mxu0 %v1067
        %v1089 = vpop.f32.mrf.mxu0
        %v1090 = vadd.f32 %v1061, %v1089
        %1091 = vdwg.mxu0
        %1092 = vmatpush.msra.mxu0 0.0
        %1093 = vmatpush.msra.mxu0 0.0
        %1094 = vmatpush.msra.mxu0 0.0
        %1095 = vmatpush.msra.mxu0 0.0
        %1096 = vmatpush.msra.mxu0 0.0
        %1097 = vmatpush.msra.mxu0 0.0
        %1098 = vmatpush.msra.mxu0 0.0
        %1099 = vmatpush.msra.mxu0 0.0
        %1100 = vmatpush.msra.mxu0 0.0
        %1101 = vmatpush.msra.mxu0 0.0
        %1102 = vmatpush.msra.mxu0 0.0
        %1103 = vmatpush.msra.mxu0 0.0
        %1104 = vmatpush.msra.mxu0 0.0
        %1105 = vmatpush.msra.mxu0 %v1048
        %1106 = vmatpush.msra.mxu0 %v1000
        %1107 = vmatpush.msra.mxu0 %v1025
        %1108 = vmatmul.f32.gmra.mxu0 %v1064
        %v1109 = vpop.f32.mrf.mxu0
        %v1110 = vadd.f32 %v1056, %v1109
        %1111 = vmatmul.f32.gmra.mxu0 %v1067
        %v1112 = vpop.f32.mrf.mxu0
        %v1113 = vadd.f32 %v1061, %v1112
        %1114 = vdwg.mxu0
        %v1115 = vmul.f32 %v1087, 0.5
        %v1116 = vmul.f32 %v1110, 0.5
        %v1117 = vmul.f32 %v1090, 0.5
        %v1118 = vmul.f32 %v1113, 0.5
        %v1119 = vmul.f32 %v1087, 0.70710677
        %v1120 = vmul.f32 %v1110, 0.70710677
        %v1121 = vmul.f32 %v1090, 0.70710677
        %v1122 = vmul.f32 %v1113, 0.70710677
        %vm1123 = vcmp.ge.f32.partialorder %v1119, 0.0
        %vm1124 = vcmp.ge.f32.partialorder %v1120, 0.0
        %vm1125 = vcmp.ge.f32.partialorder %v1121, 0.0
        %vm1126 = vcmp.ge.f32.partialorder %v1122, 0.0
        %v1127 = vsel %vm1123, 1.0, -1.0
        %v1128 = vsel %vm1124, 1.0, -1.0
        %v1129 = vsel %vm1125, 1.0, -1.0
        %v1130 = vsel %vm1126, 1.0, -1.0
        %v1131 = vand.u32 2147483647, %v1119
        %v1132 = vand.u32 2147483647, %v1120
        %v1133 = vand.u32 2147483647, %v1121
        %v1134 = vand.u32 2147483647, %v1122
        %v1135 = vmul.f32 %v1131, 0.3275911
        %v1136 = vmul.f32 %v1132, 0.3275911
        %v1137 = vmul.f32 %v1133, 0.3275911
        %v1138 = vmul.f32 %v1134, 0.3275911
        %v1139 = vadd.f32 %v1135, 1.0
        %v1140 = vadd.f32 %v1136, 1.0
        %v1141 = vadd.f32 %v1137, 1.0
        %v1142 = vadd.f32 %v1138, 1.0
        %v1143 = vrcp.pop %v1139
        %v1144 = vmul.f32 %v1139, %v1143
        %v1145 = vsub.f32 1.0, %v1144
        %v1146 = vmul.f32 %v1143, %v1145
        %v1147 = vadd.f32 %v1143, %v1146
        %vm1148 = vweird.f32 %v1139
        %vm1149 = vweird.f32 %v1143
        %vm1150 = vmor %vm1148, %vm1149
        %v1151 = vsel %vm1150, %v1143, %v1147
        %v1152 = vand.u32 2147483647, %v1139
        %vm1153 = vcmp.eq.f32.partialorder %v1152, 8.507059e+37
        %v1154 = vand.u32 %v1139, 2147483648
        %v1155 = vor.u32 1.1754944e-38, %v1154
        %v1156 = vsel %vm1153, %v1155, %v1151
        %v1157 = vmul.f32 1.0, %v1156
        %v1158 = vrcp.pop %v1140
        %v1159 = vmul.f32 %v1140, %v1158
        %v1160 = vsub.f32 1.0, %v1159
        %v1161 = vmul.f32 %v1158, %v1160
        %v1162 = vadd.f32 %v1158, %v1161
        %vm1163 = vweird.f32 %v1140
        %vm1164 = vweird.f32 %v1158
        %vm1165 = vmor %vm1163, %vm1164
        %v1166 = vsel %vm1165, %v1158, %v1162
        %v1167 = vand.u32 2147483647, %v1140
        %vm1168 = vcmp.eq.f32.partialorder %v1167, 8.507059e+37
        %v1169 = vand.u32 %v1140, 2147483648
        %v1170 = vor.u32 1.1754944e-38, %v1169
        %v1171 = vsel %vm1168, %v1170, %v1166
        %v1172 = vmul.f32 1.0, %v1171
        %v1173 = vrcp.pop %v1141
        %v1174 = vmul.f32 %v1141, %v1173
        %v1175 = vsub.f32 1.0, %v1174
        %v1176 = vmul.f32 %v1173, %v1175
        %v1177 = vadd.f32 %v1173, %v1176
        %vm1178 = vweird.f32 %v1141
        %vm1179 = vweird.f32 %v1173
        %vm1180 = vmor %vm1178, %vm1179
        %v1181 = vsel %vm1180, %v1173, %v1177
        %v1182 = vand.u32 2147483647, %v1141
        %vm1183 = vcmp.eq.f32.partialorder %v1182, 8.507059e+37
        %v1184 = vand.u32 %v1141, 2147483648
        %v1185 = vor.u32 1.1754944e-38, %v1184
        %v1186 = vsel %vm1183, %v1185, %v1181
        %v1187 = vmul.f32 1.0, %v1186
        %v1188 = vrcp.pop %v1142
        %v1189 = vmul.f32 %v1142, %v1188
        %v1190 = vsub.f32 1.0, %v1189
        %v1191 = vmul.f32 %v1188, %v1190
        %v1192 = vadd.f32 %v1188, %v1191
        %vm1193 = vweird.f32 %v1142
        %vm1194 = vweird.f32 %v1188
        %vm1195 = vmor %vm1193, %vm1194
        %v1196 = vsel %vm1195, %v1188, %v1192
        %v1197 = vand.u32 2147483647, %v1142
        %vm1198 = vcmp.eq.f32.partialorder %v1197, 8.507059e+37
        %v1199 = vand.u32 %v1142, 2147483648
        %v1200 = vor.u32 1.1754944e-38, %v1199
        %v1201 = vsel %vm1198, %v1200, %v1196
        %v1202 = vmul.f32 1.0, %v1201
        %v1203 = vmul.f32 %v1157, 1.0614054
        %v1204 = vmul.f32 %v1172, 1.0614054
        %v1205 = vmul.f32 %v1187, 1.0614054
        %v1206 = vmul.f32 %v1202, 1.0614054
        %v1207 = vadd.f32 %v1203, -1.4531521
        %v1208 = vadd.f32 %v1204, -1.4531521
        %v1209 = vadd.f32 %v1205, -1.4531521
        %v1210 = vadd.f32 %v1206, -1.4531521
        %v1211 = vmul.f32 %v1207, %v1157
        %v1212 = vmul.f32 %v1208, %v1172
        %v1213 = vmul.f32 %v1209, %v1187
        %v1214 = vmul.f32 %v1210, %v1202
        %v1215 = vadd.f32 %v1211, 1.4214138
        %v1216 = vadd.f32 %v1212, 1.4214138
        %v1217 = vadd.f32 %v1213, 1.4214138
        %v1218 = vadd.f32 %v1214, 1.4214138
        %v1219 = vmul.f32 %v1215, %v1157
        %v1220 = vmul.f32 %v1216, %v1172
        %v1221 = vmul.f32 %v1217, %v1187
        %v1222 = vmul.f32 %v1218, %v1202
        %v1223 = vadd.f32 %v1219, -0.28449672
        %v1224 = vadd.f32 %v1220, -0.28449672
        %v1225 = vadd.f32 %v1221, -0.28449672
        %v1226 = vadd.f32 %v1222, -0.28449672
        %v1227 = vmul.f32 %v1223, %v1157
        %v1228 = vmul.f32 %v1224, %v1172
        %v1229 = vmul.f32 %v1225, %v1187
        %v1230 = vmul.f32 %v1226, %v1202
        %v1231 = vadd.f32 %v1227, 0.2548296
        %v1232 = vadd.f32 %v1228, 0.2548296
        %v1233 = vadd.f32 %v1229, 0.2548296
        %v1234 = vadd.f32 %v1230, 0.2548296
        %v1235 = vmul.f32 %v1231, %v1157
        %v1236 = vmul.f32 %v1232, %v1172
        %v1237 = vmul.f32 %v1233, %v1187
        %v1238 = vmul.f32 %v1234, %v1202
        %v1239 = vsub.f32 0.0, %v1131
        %v1240 = vsub.f32 0.0, %v1132
        %v1241 = vsub.f32 0.0, %v1133
        %v1242 = vsub.f32 0.0, %v1134
        %v1243 = vmul.f32 %v1239, %v1131
        %v1244 = vmul.f32 %v1240, %v1132
        %v1245 = vmul.f32 %v1241, %v1133
        %v1246 = vmul.f32 %v1242, %v1134
        %v1247 = vmul.f32 %v1243, 1.442695
        %v1248 = vpow.pop %v1247
        %v1249 = vmul.f32 %v1244, 1.442695
        %v1250 = vpow.pop %v1249
        %v1251 = vmul.f32 %v1245, 1.442695
        %v1252 = vpow.pop %v1251
        %v1253 = vmul.f32 %v1246, 1.442695
        %v1254 = vpow.pop %v1253
        %v1255 = vmul.f32 %v1235, %v1248
        %v1256 = vmul.f32 %v1236, %v1250
        %v1257 = vmul.f32 %v1237, %v1252
        %v1258 = vmul.f32 %v1238, %v1254
        %v1259 = vsub.f32 1.0, %v1255
        %v1260 = vsub.f32 1.0, %v1256
        %v1261 = vsub.f32 1.0, %v1257
        %v1262 = vsub.f32 1.0, %v1258
        %v1263 = vmul.f32 %v1127, %v1259
        %v1264 = vmul.f32 %v1128, %v1260
        %v1265 = vmul.f32 %v1129, %v1261
        %v1266 = vmul.f32 %v1130, %v1262
        %v1267 = vadd.f32 %v1263, 1.0
        %v1268 = vadd.f32 %v1264, 1.0
        %v1269 = vadd.f32 %v1265, 1.0
        %v1270 = vadd.f32 %v1266, 1.0
        %v1271 = vmul.f32 %v1115, %v1267
        %v1272 = vmul.f32 %v1116, %v1268
        %v1273 = vmul.f32 %v1117, %v1269
        %v1274 = vmul.f32 %v1118, %v1270
        %1279 = vrot.lane.b32.xlu0 %v1271, 2
        %v1280 = vpop.permute.xlu0 %1279
        %1281 = vrot.lane.b32.xlu0 %v1272, 2
        %v1282 = vpop.permute.xlu0 %1281
        %1283 = vrot.lane.b32.xlu0 %v1273, 2
        %v1284 = vpop.permute.xlu0 %1283
        %1285 = vrot.lane.b32.xlu0 %v1274, 2
        %v1286 = vpop.permute.xlu0 %1285
        %v1287 = vsel %vm1007, %v1280, %v1282
        %v1288 = vsel %vm1007, %v1284, %v1286
        %v1293 = vsel %vm1007, 0.0, %v1280
        %v1294 = vsel %vm1007, 0.0, %v1284
        %v1295 = vsel %vm1022, %v1293, 0.0
        %v1296 = vsel %vm1023, %v1287, 0.0
        %v1297 = vsel %vm1022, %v1294, 0.0
        %v1298 = vsel %vm1023, %v1288, 0.0
        %1299 = vrot.lane.b32.xlu0 %v1271, 126
        %v1300 = vpop.permute.xlu0 %1299
        %1301 = vrot.lane.b32.xlu0 %v1272, 126
        %v1302 = vpop.permute.xlu0 %1301
        %1303 = vrot.lane.b32.xlu0 %v1273, 126
        %v1304 = vpop.permute.xlu0 %1303
        %1305 = vrot.lane.b32.xlu0 %v1274, 126
        %v1306 = vpop.permute.xlu0 %1305
        %v1307 = vsel %vm1030, %v1300, %v1302
        %v1308 = vsel %vm1030, %v1304, %v1306
        %v1313 = vsel %vm1030, %v1302, 0.0
        %v1314 = vsel %vm1030, %v1306, 0.0
        %v1315 = vsel %vm1045, %v1307, 0.0
        %v1316 = vsel %vm1046, %v1313, 0.0
        %v1317 = vsel %vm1045, %v1308, 0.0
        %v1318 = vsel %vm1046, %v1314, 0.0
        %v1319 = vld [vmem:[%s7] sm:$0xff]
        %v1320 = vld [vmem:[%s7 + $0x8] sm:$0xff]
        %v1321 = vld [vmem:[%s8] sm:$0xff]
        %v1322 = vld [vmem:[%s8 + $0x8] sm:$0xff]
        %1324 = vset.pattern.permute.xlu0 0
        %1325 = vperm.xlu0 %1324, %v1321
        %v1326 = vpop.permute.xlu0 %1325
        %1329 = vset.pattern.permute.xlu0 0
        %1330 = vperm.xlu0 %1329, %v1322
        %v1331 = vpop.permute.xlu0 %1330
        %vm1333 = vcmask 392192
        %v1335 = vsel %vm1333, %v1319, 0
        %v1338 = vsel %vm1333, %v1320, 0
        %1340 = vmatpush.msra.mxu0 0.0
        %1341 = vmatpush.msra.mxu0 0.0
        %1342 = vmatpush.msra.mxu0 0.0
        %1343 = vmatpush.msra.mxu0 0.0
        %1344 = vmatpush.msra.mxu0 0.0
        %1345 = vmatpush.msra.mxu0 0.0
        %1346 = vmatpush.msra.mxu0 0.0
        %1347 = vmatpush.msra.mxu0 0.0
        %1348 = vmatpush.msra.mxu0 0.0
        %1349 = vmatpush.msra.mxu0 0.0
        %1350 = vmatpush.msra.mxu0 %v1317
        %1351 = vmatpush.msra.mxu0 %v1315
        %1352 = vmatpush.msra.mxu0 %v1273
        %1353 = vmatpush.msra.mxu0 %v1271
        %1354 = vmatpush.msra.mxu0 %v1297
        %1355 = vmatpush.msra.mxu0 %v1295
        %1356 = vmatmul.f32.gmra.mxu0 %v1335
        %v1357 = vpop.f32.mrf.mxu0
        %v1358 = vadd.f32 %v1326, %v1357
        %1359 = vmatmul.f32.gmra.mxu0 %v1338
        %v1360 = vpop.f32.mrf.mxu0
        %v1361 = vadd.f32 %v1331, %v1360
        %1362 = vdwg.mxu0
        %1363 = vmatpush.msra.mxu0 0.0
        %1364 = vmatpush.msra.mxu0 0.0
        %1365 = vmatpush.msra.mxu0 0.0
        %1366 = vmatpush.msra.mxu0 0.0
        %1367 = vmatpush.msra.mxu0 0.0
        %1368 = vmatpush.msra.mxu0 0.0
        %1369 = vmatpush.msra.mxu0 0.0
        %1370 = vmatpush.msra.mxu0 0.0
        %1371 = vmatpush.msra.mxu0 0.0
        %1372 = vmatpush.msra.mxu0 0.0
        %1373 = vmatpush.msra.mxu0 %v1318
        %1374 = vmatpush.msra.mxu0 %v1316
        %1375 = vmatpush.msra.mxu0 %v1274
        %1376 = vmatpush.msra.mxu0 %v1272
        %1377 = vmatpush.msra.mxu0 %v1298
        %1378 = vmatpush.msra.mxu0 %v1296
        %1379 = vmatmul.f32.gmra.mxu0 %v1335
        %v1380 = vpop.f32.mrf.mxu0
        %v1381 = vadd.f32 %v1326, %v1380
        %1382 = vmatmul.f32.gmra.mxu0 %v1338
        %v1383 = vpop.f32.mrf.mxu0
        %v1384 = vadd.f32 %v1331, %v1383
        %1385 = vdwg.mxu0
        %v1386 = vadd.f32 %v1358, %v893
        %v1387 = vadd.f32 %v1381, %v916
        %v1388 = vadd.f32 %v1361, %v896
        %v1389 = vadd.f32 %v1384, %v919
        %v1390 = vmul.f32 %v1386, 0.5
        %v1391 = vmul.f32 %v1387, 0.5
        %v1392 = vmul.f32 %v1388, 0.5
        %v1393 = vmul.f32 %v1389, 0.5
        %v1394 = vmul.f32 %v1386, 0.70710677
        %v1395 = vmul.f32 %v1387, 0.70710677
        %v1396 = vmul.f32 %v1388, 0.70710677
        %v1397 = vmul.f32 %v1389, 0.70710677
        %vm1398 = vcmp.ge.f32.partialorder %v1394, 0.0
        %vm1399 = vcmp.ge.f32.partialorder %v1395, 0.0
        %vm1400 = vcmp.ge.f32.partialorder %v1396, 0.0
        %vm1401 = vcmp.ge.f32.partialorder %v1397, 0.0
        %v1402 = vsel %vm1398, 1.0, -1.0
        %v1403 = vsel %vm1399, 1.0, -1.0
        %v1404 = vsel %vm1400, 1.0, -1.0
        %v1405 = vsel %vm1401, 1.0, -1.0
        %v1406 = vand.u32 2147483647, %v1394
        %v1407 = vand.u32 2147483647, %v1395
        %v1408 = vand.u32 2147483647, %v1396
        %v1409 = vand.u32 2147483647, %v1397
        %v1410 = vmul.f32 %v1406, 0.3275911
        %v1411 = vmul.f32 %v1407, 0.3275911
        %v1412 = vmul.f32 %v1408, 0.3275911
        %v1413 = vmul.f32 %v1409, 0.3275911
        %v1414 = vadd.f32 %v1410, 1.0
        %v1415 = vadd.f32 %v1411, 1.0
        %v1416 = vadd.f32 %v1412, 1.0
        %v1417 = vadd.f32 %v1413, 1.0
        %v1418 = vrcp.pop %v1414
        %v1419 = vmul.f32 %v1414, %v1418
        %v1420 = vsub.f32 1.0, %v1419
        %v1421 = vmul.f32 %v1418, %v1420
        %v1422 = vadd.f32 %v1418, %v1421
        %vm1423 = vweird.f32 %v1414
        %vm1424 = vweird.f32 %v1418
        %vm1425 = vmor %vm1423, %vm1424
        %v1426 = vsel %vm1425, %v1418, %v1422
        %v1427 = vand.u32 2147483647, %v1414
        %vm1428 = vcmp.eq.f32.partialorder %v1427, 8.507059e+37
        %v1429 = vand.u32 %v1414, 2147483648
        %v1430 = vor.u32 1.1754944e-38, %v1429
        %v1431 = vsel %vm1428, %v1430, %v1426
        %v1432 = vmul.f32 1.0, %v1431
        %v1433 = vrcp.pop %v1415
        %v1434 = vmul.f32 %v1415, %v1433
        %v1435 = vsub.f32 1.0, %v1434
        %v1436 = vmul.f32 %v1433, %v1435
        %v1437 = vadd.f32 %v1433, %v1436
        %vm1438 = vweird.f32 %v1415
        %vm1439 = vweird.f32 %v1433
        %vm1440 = vmor %vm1438, %vm1439
        %v1441 = vsel %vm1440, %v1433, %v1437
        %v1442 = vand.u32 2147483647, %v1415
        %vm1443 = vcmp.eq.f32.partialorder %v1442, 8.507059e+37
        %v1444 = vand.u32 %v1415, 2147483648
        %v1445 = vor.u32 1.1754944e-38, %v1444
        %v1446 = vsel %vm1443, %v1445, %v1441
        %v1447 = vmul.f32 1.0, %v1446
        %v1448 = vrcp.pop %v1416
        %v1449 = vmul.f32 %v1416, %v1448
        %v1450 = vsub.f32 1.0, %v1449
        %v1451 = vmul.f32 %v1448, %v1450
        %v1452 = vadd.f32 %v1448, %v1451
        %vm1453 = vweird.f32 %v1416
        %vm1454 = vweird.f32 %v1448
        %vm1455 = vmor %vm1453, %vm1454
        %v1456 = vsel %vm1455, %v1448, %v1452
        %v1457 = vand.u32 2147483647, %v1416
        %vm1458 = vcmp.eq.f32.partialorder %v1457, 8.507059e+37
        %v1459 = vand.u32 %v1416, 2147483648
        %v1460 = vor.u32 1.1754944e-38, %v1459
        %v1461 = vsel %vm1458, %v1460, %v1456
        %v1462 = vmul.f32 1.0, %v1461
        %v1463 = vrcp.pop %v1417
        %v1464 = vmul.f32 %v1417, %v1463
        %v1465 = vsub.f32 1.0, %v1464
        %v1466 = vmul.f32 %v1463, %v1465
        %v1467 = vadd.f32 %v1463, %v1466
        %vm1468 = vweird.f32 %v1417
        %vm1469 = vweird.f32 %v1463
        %vm1470 = vmor %vm1468, %vm1469
        %v1471 = vsel %vm1470, %v1463, %v1467
        %v1472 = vand.u32 2147483647, %v1417
        %vm1473 = vcmp.eq.f32.partialorder %v1472, 8.507059e+37
        %v1474 = vand.u32 %v1417, 2147483648
        %v1475 = vor.u32 1.1754944e-38, %v1474
        %v1476 = vsel %vm1473, %v1475, %v1471
        %v1477 = vmul.f32 1.0, %v1476
        %v1478 = vmul.f32 %v1432, 1.0614054
        %v1479 = vmul.f32 %v1447, 1.0614054
        %v1480 = vmul.f32 %v1462, 1.0614054
        %v1481 = vmul.f32 %v1477, 1.0614054
        %v1482 = vadd.f32 %v1478, -1.4531521
        %v1483 = vadd.f32 %v1479, -1.4531521
        %v1484 = vadd.f32 %v1480, -1.4531521
        %v1485 = vadd.f32 %v1481, -1.4531521
        %v1486 = vmul.f32 %v1482, %v1432
        %v1487 = vmul.f32 %v1483, %v1447
        %v1488 = vmul.f32 %v1484, %v1462
        %v1489 = vmul.f32 %v1485, %v1477
        %v1490 = vadd.f32 %v1486, 1.4214138
        %v1491 = vadd.f32 %v1487, 1.4214138
        %v1492 = vadd.f32 %v1488, 1.4214138
        %v1493 = vadd.f32 %v1489, 1.4214138
        %v1494 = vmul.f32 %v1490, %v1432
        %v1495 = vmul.f32 %v1491, %v1447
        %v1496 = vmul.f32 %v1492, %v1462
        %v1497 = vmul.f32 %v1493, %v1477
        %v1498 = vadd.f32 %v1494, -0.28449672
        %v1499 = vadd.f32 %v1495, -0.28449672
        %v1500 = vadd.f32 %v1496, -0.28449672
        %v1501 = vadd.f32 %v1497, -0.28449672
        %v1502 = vmul.f32 %v1498, %v1432
        %v1503 = vmul.f32 %v1499, %v1447
        %v1504 = vmul.f32 %v1500, %v1462
        %v1505 = vmul.f32 %v1501, %v1477
        %v1506 = vadd.f32 %v1502, 0.2548296
        %v1507 = vadd.f32 %v1503, 0.2548296
        %v1508 = vadd.f32 %v1504, 0.2548296
        %v1509 = vadd.f32 %v1505, 0.2548296
        %v1510 = vmul.f32 %v1506, %v1432
        %v1511 = vmul.f32 %v1507, %v1447
        %v1512 = vmul.f32 %v1508, %v1462
        %v1513 = vmul.f32 %v1509, %v1477
        %v1514 = vsub.f32 0.0, %v1406
        %v1515 = vsub.f32 0.0, %v1407
        %v1516 = vsub.f32 0.0, %v1408
        %v1517 = vsub.f32 0.0, %v1409
        %v1518 = vmul.f32 %v1514, %v1406
        %v1519 = vmul.f32 %v1515, %v1407
        %v1520 = vmul.f32 %v1516, %v1408
        %v1521 = vmul.f32 %v1517, %v1409
        %v1522 = vmul.f32 %v1518, 1.442695
        %v1523 = vpow.pop %v1522
        %v1524 = vmul.f32 %v1519, 1.442695
        %v1525 = vpow.pop %v1524
        %v1526 = vmul.f32 %v1520, 1.442695
        %v1527 = vpow.pop %v1526
        %v1528 = vmul.f32 %v1521, 1.442695
        %v1529 = vpow.pop %v1528
        %v1530 = vmul.f32 %v1510, %v1523
        %v1531 = vmul.f32 %v1511, %v1525
        %v1532 = vmul.f32 %v1512, %v1527
        %v1533 = vmul.f32 %v1513, %v1529
        %v1534 = vsub.f32 1.0, %v1530
        %v1535 = vsub.f32 1.0, %v1531
        %v1536 = vsub.f32 1.0, %v1532
        %v1537 = vsub.f32 1.0, %v1533
        %v1538 = vmul.f32 %v1402, %v1534
        %v1539 = vmul.f32 %v1403, %v1535
        %v1540 = vmul.f32 %v1404, %v1536
        %v1541 = vmul.f32 %v1405, %v1537
        %v1542 = vadd.f32 %v1538, 1.0
        %v1543 = vadd.f32 %v1539, 1.0
        %v1544 = vadd.f32 %v1540, 1.0
        %v1545 = vadd.f32 %v1541, 1.0
        %v1546 = vmul.f32 %v1390, %v1542
        %v1547 = vmul.f32 %v1391, %v1543
        %v1548 = vmul.f32 %v1392, %v1544
        %v1549 = vmul.f32 %v1393, %v1545
        %1554 = vrot.lane.b32.xlu0 %v1546, 4
        %v1555 = vpop.permute.xlu0 %1554
        %1556 = vrot.lane.b32.xlu0 %v1547, 4
        %v1557 = vpop.permute.xlu0 %1556
        %1558 = vrot.lane.b32.xlu0 %v1548, 4
        %v1559 = vpop.permute.xlu0 %1558
        %1560 = vrot.lane.b32.xlu0 %v1549, 4
        %v1561 = vpop.permute.xlu0 %1560
        %vm1562 = vcmask 31744
        %v1563 = vsel %vm1562, %v1555, %v1557
        %v1564 = vsel %vm1562, %v1559, %v1561
        %v1569 = vsel %vm1562, 0.0, %v1555
        %v1570 = vsel %vm1562, 0.0, %v1559
        %v1571 = vadd.s32 %v517, 4294967292
        %v1572 = vadd.s32 %v518, 4294967292
        %vm1573 = vcmp.ge.s32.totalorder %v1571, 0
        %vm1574 = vcmp.ge.s32.totalorder %v1572, 0
        %vm1575 = vcmp.lt.s32.totalorder %v1571, 64
        %vm1576 = vcmp.lt.s32.totalorder %v1572, 64
        %vm1577 = vmand %vm1573, %vm1575
        %vm1578 = vmand %vm1574, %vm1576
        %v1579 = vsel %vm1577, 1, 0
        %v1580 = vsel %vm1578, 1, 0
        %vm1581 = vcmp.eq.s32.totalorder %v1579, 1
        %vm1582 = vcmp.eq.s32.totalorder %v1580, 1
        %v1583 = vsel %vm1581, %v1569, 0.0
        %v1584 = vsel %vm1582, %v1563, 0.0
        %v1585 = vsel %vm1581, %v1570, 0.0
        %v1586 = vsel %vm1582, %v1564, 0.0
        %1587 = vrot.lane.b32.xlu0 %v1546, 124
        %v1588 = vpop.permute.xlu0 %1587
        %1589 = vrot.lane.b32.xlu0 %v1547, 124
        %v1590 = vpop.permute.xlu0 %1589
        %1591 = vrot.lane.b32.xlu0 %v1548, 124
        %v1592 = vpop.permute.xlu0 %1591
        %1593 = vrot.lane.b32.xlu0 %v1549, 124
        %v1594 = vpop.permute.xlu0 %1593
        %vm1595 = vcmask 1014784
        %v1596 = vsel %vm1595, %v1588, %v1590
        %v1597 = vsel %vm1595, %v1592, %v1594
        %v1602 = vsel %vm1595, %v1590, 0.0
        %v1603 = vsel %vm1595, %v1594, 0.0
        %v1604 = vadd.s32 %v517, 4
        %v1605 = vadd.s32 %v518, 4
        %vm1606 = vcmp.ge.s32.totalorder %v1604, 0
        %vm1607 = vcmp.ge.s32.totalorder %v1605, 0
        %vm1608 = vcmp.lt.s32.totalorder %v1604, 64
        %vm1609 = vcmp.lt.s32.totalorder %v1605, 64
        %vm1610 = vmand %vm1606, %vm1608
        %vm1611 = vmand %vm1607, %vm1609
        %v1612 = vsel %vm1610, 1, 0
        %v1613 = vsel %vm1611, 1, 0
        %vm1614 = vcmp.eq.s32.totalorder %v1612, 1
        %vm1615 = vcmp.eq.s32.totalorder %v1613, 1
        %v1616 = vsel %vm1614, %v1596, 0.0
        %v1617 = vsel %vm1615, %v1602, 0.0
        %v1618 = vsel %vm1614, %v1597, 0.0
        %v1619 = vsel %vm1615, %v1603, 0.0
        %v1620 = vld [vmem:[%s11] sm:$0xff]
        %v1621 = vld [vmem:[%s11 + $0x8] sm:$0xff]
        %v1622 = vld [vmem:[%s12] sm:$0xff]
        %v1623 = vld [vmem:[%s12 + $0x8] sm:$0xff]
        %1625 = vset.pattern.permute.xlu0 0
        %1626 = vperm.xlu0 %1625, %v1622
        %v1627 = vpop.permute.xlu0 %1626
        %1630 = vset.pattern.permute.xlu0 0
        %1631 = vperm.xlu0 %1630, %v1623
        %v1632 = vpop.permute.xlu0 %1631
        %v1635 = vsel %vm1333, %v1620, 0
        %v1638 = vsel %vm1333, %v1621, 0
        %1640 = vmatpush.msra.mxu0 0.0
        %1641 = vmatpush.msra.mxu0 0.0
        %1642 = vmatpush.msra.mxu0 0.0
        %1643 = vmatpush.msra.mxu0 0.0
        %1644 = vmatpush.msra.mxu0 0.0
        %1645 = vmatpush.msra.mxu0 0.0
        %1646 = vmatpush.msra.mxu0 0.0
        %1647 = vmatpush.msra.mxu0 0.0
        %1648 = vmatpush.msra.mxu0 0.0
        %1649 = vmatpush.msra.mxu0 0.0
        %1650 = vmatpush.msra.mxu0 %v1618
        %1651 = vmatpush.msra.mxu0 %v1616
        %1652 = vmatpush.msra.mxu0 %v1548
        %1653 = vmatpush.msra.mxu0 %v1546
        %1654 = vmatpush.msra.mxu0 %v1585
        %1655 = vmatpush.msra.mxu0 %v1583
        %1656 = vmatmul.f32.gmra.mxu0 %v1635
        %v1657 = vpop.f32.mrf.mxu0
        %v1658 = vadd.f32 %v1627, %v1657
        %1659 = vmatmul.f32.gmra.mxu0 %v1638
        %v1660 = vpop.f32.mrf.mxu0
        %v1661 = vadd.f32 %v1632, %v1660
        %1662 = vdwg.mxu0
        %1663 = vmatpush.msra.mxu0 0.0
        %1664 = vmatpush.msra.mxu0 0.0
        %1665 = vmatpush.msra.mxu0 0.0
        %1666 = vmatpush.msra.mxu0 0.0
        %1667 = vmatpush.msra.mxu0 0.0
        %1668 = vmatpush.msra.mxu0 0.0
        %1669 = vmatpush.msra.mxu0 0.0
        %1670 = vmatpush.msra.mxu0 0.0
        %1671 = vmatpush.msra.mxu0 0.0
        %1672 = vmatpush.msra.mxu0 0.0
        %1673 = vmatpush.msra.mxu0 %v1619
        %1674 = vmatpush.msra.mxu0 %v1617
        %1675 = vmatpush.msra.mxu0 %v1549
        %1676 = vmatpush.msra.mxu0 %v1547
        %1677 = vmatpush.msra.mxu0 %v1586
        %1678 = vmatpush.msra.mxu0 %v1584
        %1679 = vmatmul.f32.gmra.mxu0 %v1635
        %v1680 = vpop.f32.mrf.mxu0
        %v1681 = vadd.f32 %v1627, %v1680
        %1682 = vmatmul.f32.gmra.mxu0 %v1638
        %v1683 = vpop.f32.mrf.mxu0
        %v1684 = vadd.f32 %v1632, %v1683
        %1685 = vdwg.mxu0
        %v1686 = vmul.f32 %v1658, 0.5
        %v1687 = vmul.f32 %v1681, 0.5
        %v1688 = vmul.f32 %v1661, 0.5
        %v1689 = vmul.f32 %v1684, 0.5
        %v1690 = vmul.f32 %v1658, 0.70710677
        %v1691 = vmul.f32 %v1681, 0.70710677
        %v1692 = vmul.f32 %v1661, 0.70710677
        %v1693 = vmul.f32 %v1684, 0.70710677
        %vm1694 = vcmp.ge.f32.partialorder %v1690, 0.0
        %vm1695 = vcmp.ge.f32.partialorder %v1691, 0.0
        %vm1696 = vcmp.ge.f32.partialorder %v1692, 0.0
        %vm1697 = vcmp.ge.f32.partialorder %v1693, 0.0
        %v1698 = vsel %vm1694, 1.0, -1.0
        %v1699 = vsel %vm1695, 1.0, -1.0
        %v1700 = vsel %vm1696, 1.0, -1.0
        %v1701 = vsel %vm1697, 1.0, -1.0
        %v1702 = vand.u32 2147483647, %v1690
        %v1703 = vand.u32 2147483647, %v1691
        %v1704 = vand.u32 2147483647, %v1692
        %v1705 = vand.u32 2147483647, %v1693
        %v1706 = vmul.f32 %v1702, 0.3275911
        %v1707 = vmul.f32 %v1703, 0.3275911
        %v1708 = vmul.f32 %v1704, 0.3275911
        %v1709 = vmul.f32 %v1705, 0.3275911
        %v1710 = vadd.f32 %v1706, 1.0
        %v1711 = vadd.f32 %v1707, 1.0
        %v1712 = vadd.f32 %v1708, 1.0
        %v1713 = vadd.f32 %v1709, 1.0
        %v1714 = vrcp.pop %v1710
        %v1715 = vmul.f32 %v1710, %v1714
        %v1716 = vsub.f32 1.0, %v1715
        %v1717 = vmul.f32 %v1714, %v1716
        %v1718 = vadd.f32 %v1714, %v1717
        %vm1719 = vweird.f32 %v1710
        %vm1720 = vweird.f32 %v1714
        %vm1721 = vmor %vm1719, %vm1720
        %v1722 = vsel %vm1721, %v1714, %v1718
        %v1723 = vand.u32 2147483647, %v1710
        %vm1724 = vcmp.eq.f32.partialorder %v1723, 8.507059e+37
        %v1725 = vand.u32 %v1710, 2147483648
        %v1726 = vor.u32 1.1754944e-38, %v1725
        %v1727 = vsel %vm1724, %v1726, %v1722
        %v1728 = vmul.f32 1.0, %v1727
        %v1729 = vrcp.pop %v1711
        %v1730 = vmul.f32 %v1711, %v1729
        %v1731 = vsub.f32 1.0, %v1730
        %v1732 = vmul.f32 %v1729, %v1731
        %v1733 = vadd.f32 %v1729, %v1732
        %vm1734 = vweird.f32 %v1711
        %vm1735 = vweird.f32 %v1729
        %vm1736 = vmor %vm1734, %vm1735
        %v1737 = vsel %vm1736, %v1729, %v1733
        %v1738 = vand.u32 2147483647, %v1711
        %vm1739 = vcmp.eq.f32.partialorder %v1738, 8.507059e+37
        %v1740 = vand.u32 %v1711, 2147483648
        %v1741 = vor.u32 1.1754944e-38, %v1740
        %v1742 = vsel %vm1739, %v1741, %v1737
        %v1743 = vmul.f32 1.0, %v1742
        %v1744 = vrcp.pop %v1712
        %v1745 = vmul.f32 %v1712, %v1744
        %v1746 = vsub.f32 1.0, %v1745
        %v1747 = vmul.f32 %v1744, %v1746
        %v1748 = vadd.f32 %v1744, %v1747
        %vm1749 = vweird.f32 %v1712
        %vm1750 = vweird.f32 %v1744
        %vm1751 = vmor %vm1749, %vm1750
        %v1752 = vsel %vm1751, %v1744, %v1748
        %v1753 = vand.u32 2147483647, %v1712
        %vm1754 = vcmp.eq.f32.partialorder %v1753, 8.507059e+37
        %v1755 = vand.u32 %v1712, 2147483648
        %v1756 = vor.u32 1.1754944e-38, %v1755
        %v1757 = vsel %vm1754, %v1756, %v1752
        %v1758 = vmul.f32 1.0, %v1757
        %v1759 = vrcp.pop %v1713
        %v1760 = vmul.f32 %v1713, %v1759
        %v1761 = vsub.f32 1.0, %v1760
        %v1762 = vmul.f32 %v1759, %v1761
        %v1763 = vadd.f32 %v1759, %v1762
        %vm1764 = vweird.f32 %v1713
        %vm1765 = vweird.f32 %v1759
        %vm1766 = vmor %vm1764, %vm1765
        %v1767 = vsel %vm1766, %v1759, %v1763
        %v1768 = vand.u32 2147483647, %v1713
        %vm1769 = vcmp.eq.f32.partialorder %v1768, 8.507059e+37
        %v1770 = vand.u32 %v1713, 2147483648
        %v1771 = vor.u32 1.1754944e-38, %v1770
        %v1772 = vsel %vm1769, %v1771, %v1767
        %v1773 = vmul.f32 1.0, %v1772
        %v1774 = vmul.f32 %v1728, 1.0614054
        %v1775 = vmul.f32 %v1743, 1.0614054
        %v1776 = vmul.f32 %v1758, 1.0614054
        %v1777 = vmul.f32 %v1773, 1.0614054
        %v1778 = vadd.f32 %v1774, -1.4531521
        %v1779 = vadd.f32 %v1775, -1.4531521
        %v1780 = vadd.f32 %v1776, -1.4531521
        %v1781 = vadd.f32 %v1777, -1.4531521
        %v1782 = vmul.f32 %v1778, %v1728
        %v1783 = vmul.f32 %v1779, %v1743
        %v1784 = vmul.f32 %v1780, %v1758
        %v1785 = vmul.f32 %v1781, %v1773
        %v1786 = vadd.f32 %v1782, 1.4214138
        %v1787 = vadd.f32 %v1783, 1.4214138
        %v1788 = vadd.f32 %v1784, 1.4214138
        %v1789 = vadd.f32 %v1785, 1.4214138
        %v1790 = vmul.f32 %v1786, %v1728
        %v1791 = vmul.f32 %v1787, %v1743
        %v1792 = vmul.f32 %v1788, %v1758
        %v1793 = vmul.f32 %v1789, %v1773
        %v1794 = vadd.f32 %v1790, -0.28449672
        %v1795 = vadd.f32 %v1791, -0.28449672
        %v1796 = vadd.f32 %v1792, -0.28449672
        %v1797 = vadd.f32 %v1793, -0.28449672
        %v1798 = vmul.f32 %v1794, %v1728
        %v1799 = vmul.f32 %v1795, %v1743
        %v1800 = vmul.f32 %v1796, %v1758
        %v1801 = vmul.f32 %v1797, %v1773
        %v1802 = vadd.f32 %v1798, 0.2548296
        %v1803 = vadd.f32 %v1799, 0.2548296
        %v1804 = vadd.f32 %v1800, 0.2548296
        %v1805 = vadd.f32 %v1801, 0.2548296
        %v1806 = vmul.f32 %v1802, %v1728
        %v1807 = vmul.f32 %v1803, %v1743
        %v1808 = vmul.f32 %v1804, %v1758
        %v1809 = vmul.f32 %v1805, %v1773
        %v1810 = vsub.f32 0.0, %v1702
        %v1811 = vsub.f32 0.0, %v1703
        %v1812 = vsub.f32 0.0, %v1704
        %v1813 = vsub.f32 0.0, %v1705
        %v1814 = vmul.f32 %v1810, %v1702
        %v1815 = vmul.f32 %v1811, %v1703
        %v1816 = vmul.f32 %v1812, %v1704
        %v1817 = vmul.f32 %v1813, %v1705
        %v1818 = vmul.f32 %v1814, 1.442695
        %v1819 = vpow.pop %v1818
        %v1820 = vmul.f32 %v1815, 1.442695
        %v1821 = vpow.pop %v1820
        %v1822 = vmul.f32 %v1816, 1.442695
        %v1823 = vpow.pop %v1822
        %v1824 = vmul.f32 %v1817, 1.442695
        %v1825 = vpow.pop %v1824
        %v1826 = vmul.f32 %v1806, %v1819
        %v1827 = vmul.f32 %v1807, %v1821
        %v1828 = vmul.f32 %v1808, %v1823
        %v1829 = vmul.f32 %v1809, %v1825
        %v1830 = vsub.f32 1.0, %v1826
        %v1831 = vsub.f32 1.0, %v1827
        %v1832 = vsub.f32 1.0, %v1828
        %v1833 = vsub.f32 1.0, %v1829
        %v1834 = vmul.f32 %v1698, %v1830
        %v1835 = vmul.f32 %v1699, %v1831
        %v1836 = vmul.f32 %v1700, %v1832
        %v1837 = vmul.f32 %v1701, %v1833
        %v1838 = vadd.f32 %v1834, 1.0
        %v1839 = vadd.f32 %v1835, 1.0
        %v1840 = vadd.f32 %v1836, 1.0
        %v1841 = vadd.f32 %v1837, 1.0
        %v1842 = vmul.f32 %v1686, %v1838
        %v1843 = vmul.f32 %v1687, %v1839
        %v1844 = vmul.f32 %v1688, %v1840
        %v1845 = vmul.f32 %v1689, %v1841
        %1850 = vrot.lane.b32.xlu0 %v1842, 4
        %v1851 = vpop.permute.xlu0 %1850
        %1852 = vrot.lane.b32.xlu0 %v1843, 4
        %v1853 = vpop.permute.xlu0 %1852
        %1854 = vrot.lane.b32.xlu0 %v1844, 4
        %v1855 = vpop.permute.xlu0 %1854
        %1856 = vrot.lane.b32.xlu0 %v1845, 4
        %v1857 = vpop.permute.xlu0 %1856
        %v1858 = vsel %vm1562, %v1851, %v1853
        %v1859 = vsel %vm1562, %v1855, %v1857
        %v1864 = vsel %vm1562, 0.0, %v1851
        %v1865 = vsel %vm1562, 0.0, %v1855
        %v1866 = vsel %vm1581, %v1864, 0.0
        %v1867 = vsel %vm1582, %v1858, 0.0
        %v1868 = vsel %vm1581, %v1865, 0.0
        %v1869 = vsel %vm1582, %v1859, 0.0
        %1870 = vrot.lane.b32.xlu0 %v1842, 124
        %v1871 = vpop.permute.xlu0 %1870
        %1872 = vrot.lane.b32.xlu0 %v1843, 124
        %v1873 = vpop.permute.xlu0 %1872
        %1874 = vrot.lane.b32.xlu0 %v1844, 124
        %v1875 = vpop.permute.xlu0 %1874
        %1876 = vrot.lane.b32.xlu0 %v1845, 124
        %v1877 = vpop.permute.xlu0 %1876
        %v1878 = vsel %vm1595, %v1871, %v1873
        %v1879 = vsel %vm1595, %v1875, %v1877
        %v1884 = vsel %vm1595, %v1873, 0.0
        %v1885 = vsel %vm1595, %v1877, 0.0
        %v1886 = vsel %vm1614, %v1878, 0.0
        %v1887 = vsel %vm1615, %v1884, 0.0
        %v1888 = vsel %vm1614, %v1879, 0.0
        %v1889 = vsel %vm1615, %v1885, 0.0
        %v1890 = vld [vmem:[%s13] sm:$0xff]
        %v1891 = vld [vmem:[%s13 + $0x8] sm:$0xff]
        %v1892 = vld [vmem:[%s14] sm:$0xff]
        %v1893 = vld [vmem:[%s14 + $0x8] sm:$0xff]
        %1895 = vset.pattern.permute.xlu0 0
        %1896 = vperm.xlu0 %1895, %v1892
        %v1897 = vpop.permute.xlu0 %1896
        %1900 = vset.pattern.permute.xlu0 0
        %1901 = vperm.xlu0 %1900, %v1893
        %v1902 = vpop.permute.xlu0 %1901
        %v1905 = vsel %vm1333, %v1890, 0
        %v1908 = vsel %vm1333, %v1891, 0
        %1910 = vmatpush.msra.mxu0 0.0
        %1911 = vmatpush.msra.mxu0 0.0
        %1912 = vmatpush.msra.mxu0 0.0
        %1913 = vmatpush.msra.mxu0 0.0
        %1914 = vmatpush.msra.mxu0 0.0
        %1915 = vmatpush.msra.mxu0 0.0
        %1916 = vmatpush.msra.mxu0 0.0
        %1917 = vmatpush.msra.mxu0 0.0
        %1918 = vmatpush.msra.mxu0 0.0
        %1919 = vmatpush.msra.mxu0 0.0
        %1920 = vmatpush.msra.mxu0 %v1888
        %1921 = vmatpush.msra.mxu0 %v1886
        %1922 = vmatpush.msra.mxu0 %v1844
        %1923 = vmatpush.msra.mxu0 %v1842
        %1924 = vmatpush.msra.mxu0 %v1868
        %1925 = vmatpush.msra.mxu0 %v1866
        %1926 = vmatmul.f32.gmra.mxu0 %v1905
        %v1927 = vpop.f32.mrf.mxu0
        %v1928 = vadd.f32 %v1897, %v1927
        %1929 = vmatmul.f32.gmra.mxu0 %v1908
        %v1930 = vpop.f32.mrf.mxu0
        %v1931 = vadd.f32 %v1902, %v1930
        %1932 = vdwg.mxu0
        %1933 = vmatpush.msra.mxu0 0.0
        %1934 = vmatpush.msra.mxu0 0.0
        %1935 = vmatpush.msra.mxu0 0.0
        %1936 = vmatpush.msra.mxu0 0.0
        %1937 = vmatpush.msra.mxu0 0.0
        %1938 = vmatpush.msra.mxu0 0.0
        %1939 = vmatpush.msra.mxu0 0.0
        %1940 = vmatpush.msra.mxu0 0.0
        %1941 = vmatpush.msra.mxu0 0.0
        %1942 = vmatpush.msra.mxu0 0.0
        %1943 = vmatpush.msra.mxu0 %v1889
        %1944 = vmatpush.msra.mxu0 %v1887
        %1945 = vmatpush.msra.mxu0 %v1845
        %1946 = vmatpush.msra.mxu0 %v1843
        %1947 = vmatpush.msra.mxu0 %v1869
        %1948 = vmatpush.msra.mxu0 %v1867
        %1949 = vmatmul.f32.gmra.mxu0 %v1905
        %v1950 = vpop.f32.mrf.mxu0
        %v1951 = vadd.f32 %v1897, %v1950
        %1952 = vmatmul.f32.gmra.mxu0 %v1908
        %v1953 = vpop.f32.mrf.mxu0
        %v1954 = vadd.f32 %v1902, %v1953
        %1955 = vdwg.mxu0
        %v1956 = vadd.f32 %v1928, %v1386
        %v1957 = vadd.f32 %v1951, %v1387
        %v1958 = vadd.f32 %v1931, %v1388
        %v1959 = vadd.f32 %v1954, %v1389
        %1960 = vst [vmem:[%s484] sm:$0xff] %v1956
        %1961 = vst [vmem:[%s484 + $0x8] sm:$0xff] %v1957
        %1962 = vst [vmem:[%s484 + $0x10] sm:$0xff] %v1958
        %1963 = vst [vmem:[%s484 + $0x18] sm:$0xff] %v1959
        %s1964 = sand.u32 %s354, 1
        %s1965 = sand.u32 %s354, 1
        %s1966 = smul.addr %s1965, 32
        %s1967 = scalar_lea.vmem [#allocation2], %s1966
        // Predicated region
        $region81: #{dilated_conv_encoder_forward.1} parent=79 // pred_check
          %p1968 = pneg %p364
        $region82: #{dilated_conv_encoder_forward.1} parent=79 // pred_check_branch
          %1970 = sbr.rel (%p1968) target = $region84
        $region83: #{dilated_conv_encoder_forward.1} parent=79 // pred_region
          %s1971 = smul.u32 2, %s26
          %s1972 = smul.addr %s1971, 8
          %s1973 = scalar_lea.vmem %s15, %s1972
          // Predicated region
          $region85: #{dilated_conv_encoder_forward.1} parent=83 // pred_check
            _
          $region86: #{dilated_conv_encoder_forward.1} parent=83 // pred_check_branch
            %1975 = sbr.rel (0) target = $region88
          $region87: #{dilated_conv_encoder_forward.1} parent=83 // pred_region
            // Predicated region
            $region89: #{dilated_conv_encoder_forward.1} parent=87 // pred_check
              _
            $region90: #{dilated_conv_encoder_forward.1} parent=87 // pred_check_branch
              %1977 = sbr.rel (0) target = $region92
            $region91: #{dilated_conv_encoder_forward.1} parent=87 // pred_region
              loop: start=0, step=1, limit=1
              $region93: #{dilated_conv_encoder_forward.1} parent=91 // loop_pre_header
                _
              $region94: #{dilated_conv_encoder_forward.1} parent=91 // loop_header
                %s1979 = sphi 0, %s1983
                %p1980 = scmp.ge.s32.totalorder %s1979, 1
                %s1984 = sphi %s1967, %s1967
                %s1985 = sphi %s1973, %s1973
              $region95: #{dilated_conv_encoder_forward.1} parent=91 // loop_header_branch
                %1982 = sbr.rel (%p1980) target = $region99
              $region96: #{dilated_conv_encoder_forward.1} parent=91 // loop_body
                %v1986 = vld [vmem:[%s1984] sm:$0xff]
                %1987 = vst [vmem:[%s1985] sm:$0xff] %v1986
                %v1988 = vld [vmem:[%s1984 + $0x8] sm:$0xff]
                %1989 = vst [vmem:[%s1985 + $0x8] sm:$0xff] %v1988
                %v1990 = vld [vmem:[%s1984 + $0x10] sm:$0xff]
                %1991 = vst [vmem:[%s1985 + $0x20] sm:$0xff] %v1990
                %v1992 = vld [vmem:[%s1984 + $0x18] sm:$0xff]
                %1993 = vst [vmem:[%s1985 + $0x28] sm:$0xff] %v1992
              $region97: #{dilated_conv_encoder_forward.1} parent=91 // loop_footer
                %s1983 = sadd.s32 1, %s1979
              $region98: #{dilated_conv_encoder_forward.1} parent=91 // loop_footer_branch
                %1978 = sbr.rel target = $region94
              $region99: #{dilated_conv_encoder_forward.1} parent=91 // loop_exit
                _
            $region92: #{dilated_conv_encoder_forward.1} parent=87 // pred_fallthru
              _
            // Predicated region
            $region100: #{dilated_conv_encoder_forward.1} parent=87 // pred_check
              _
            $region101: #{dilated_conv_encoder_forward.1} parent=87 // pred_check_branch
              %1995 = sbr.rel target = $region103
            $region102: #{dilated_conv_encoder_forward.1} parent=87 // pred_region
              _
            $region103: #{dilated_conv_encoder_forward.1} parent=87 // pred_fallthru
              _
          $region88: #{dilated_conv_encoder_forward.1} parent=83 // pred_fallthru
            _
          %1996 = vnop
        $region84: #{dilated_conv_encoder_forward.1} parent=79 // pred_fallthru
          _
      $region80: #{dilated_conv_encoder_forward.1} parent=5 // pred_fallthru
        _
      %p1997 = scmp.le.s32.totalorder 2, %s21
      // Predicated region
      $region104: #{dilated_conv_encoder_forward.1} parent=5 // pred_check
        %p1998 = pneg %p1997
      $region105: #{dilated_conv_encoder_forward.1} parent=5 // pred_check_branch
        %2000 = sbr.rel (%p1998) target = $region107
      $region106: #{dilated_conv_encoder_forward.1} parent=5 // pred_region
        %s2001 = ssub.s32 %s21, 2
        // Predicated region
        $region108: #{dilated_conv_encoder_forward.1} parent=106 // pred_check
          %p2002 = pneg %p370
        $region109: #{dilated_conv_encoder_forward.1} parent=106 // pred_check_branch
          %2004 = sbr.rel (%p2002) target = $region111
        $region110: #{dilated_conv_encoder_forward.1} parent=106 // pred_region
          %s2005 = sand.u32 %s355, 1
          %s2006 = sand.u32 %s355, 1
          %s2007 = smul.addr %s2006, 32
          %s2008 = scalar_lea.vmem [#allocation2], %s2007
        $region111: #{dilated_conv_encoder_forward.1} parent=106 // pred_fallthru
          _
      $region107: #{dilated_conv_encoder_forward.1} parent=5 // pred_fallthru
        _
    $region6: #{dilated_conv_encoder_forward.1} parent=1 // loop_footer
      %s25 = sadd.s32 1, %s21
    $region7: #{dilated_conv_encoder_forward.1} parent=1 // loop_footer_branch
      %20 = sbr.rel target = $region3
    $region8: #{dilated_conv_encoder_forward.1} parent=1 // loop_exit
      _

</llo_original>
